<compile_context>
chip_gen: v7x
topology: tpu7x:2x2x1
jax: 0.10.0
libtpu: 0.0.40
codegen_flags: <defaults>
</compile_context>

<pallas_src>
import math

import jax
import jax.numpy as jnp
from jax import lax
from jax.experimental import pallas as pl
from jax.experimental.pallas import tpu as pltpu

# ----------------------------- config (small, ALBERT-like) -----------------------------
BATCH = 2
SEQ = 8
HIDDEN = 32
NUM_HEADS = 4
HEAD_DIM = HIDDEN // NUM_HEADS
LN_EPS = 1e-12


def albert_attention_kernel(
    hs_ref,     # [B*S, H]   flattened hidden_states
    mask_ref,   # [B, S]     additive attention mask
    wqkv_ref,   # [H, 3H]    packed (Wq | Wk | Wv), stored [in, out]
    bqkv_ref,   # [1, 3H]    packed (bq | bk | bv)
    wd_ref,     # [H, H]     output projection, stored [in, out]
    vec_ref,    # [3, H]     rows: (dense bias, LayerNorm gamma, LayerNorm beta)
    out_ref,    # [B*S, H]
):
    hs = hs_ref[...].astype(jnp.float32)                       # [B*S, H]
    mask = mask_ref[...].astype(jnp.float32)                   # [B, S]

    # Fused Q/K/V projection: one MXU push instead of three.
    qkv = (
        jnp.dot(hs, wqkv_ref[...], preferred_element_type=jnp.float32)
        + bqkv_ref[...]
    )                                                          # [B*S, 3H]

    scale = 1.0 / math.sqrt(HEAD_DIM)

    # Per-(batch, head) attention: statically unrolled, 2-D MXU dots only.
    batch_ctx = []
    for b in range(BATCH):
        r0 = b * SEQ
        add_mask = mask[b:b + 1, :]                            # [1, S] -> bcast over query rows
        head_ctx = []
        for h in range(NUM_HEADS):
            c0 = h * HEAD_DIM
            qh = qkv[r0:r0 + SEQ, c0:c0 + HEAD_DIM]                             # [S, d]
            kh = qkv[r0:r0 + SEQ, HIDDEN + c0:HIDDEN + c0 + HEAD_DIM]           # [S, d]
            vh = qkv[r0:r0 + SEQ, 2 * HIDDEN + c0:2 * HIDDEN + c0 + HEAD_DIM]   # [S, d]

            # q @ k^T with the transpose folded into the contraction (no kh.T relayout).
            scores = lax.dot_general(
                qh, kh, (((1,), (1,)), ((), ())),
                preferred_element_type=jnp.float32,
            ) * scale + add_mask                               # [S, S]

            # numerically-stable softmax over the key axis
            scores = scores - jnp.max(scores, axis=-1, keepdims=True)
            probs = jnp.exp(scores)
            # exact reciprocal: keeps 1e-4 parity with the f32 reference
            # (approx=True would route to the EUP at slightly lower precision)
            probs = probs * pl.reciprocal(jnp.sum(probs, axis=-1, keepdims=True))

            head_ctx.append(
                jnp.dot(probs, vh, preferred_element_type=jnp.float32)
            )
        batch_ctx.append(jnp.concatenate(head_ctx, axis=-1))   # [S, H]
    context = jnp.concatenate(batch_ctx, axis=0)               # [B*S, H]

    vecs = vec_ref[...].astype(jnp.float32)
    b_dense = vecs[0:1, :]
    gamma = vecs[1:2, :]
    beta = vecs[2:3, :]

    # output projection + residual + LayerNorm
    proj = jnp.dot(context, wd_ref[...], preferred_element_type=jnp.float32) + b_dense
    x = hs + proj
    mu = jnp.mean(x, axis=-1, keepdims=True)
    var = jnp.mean((x - mu) * (x - mu), axis=-1, keepdims=True)
    y = (x - mu) * lax.rsqrt(var + LN_EPS)
    out_ref[...] = (y * gamma + beta).astype(out_ref.dtype)


def albert_attention(hidden_states, attention_mask, params):
    B, S, H = hidden_states.shape
    wq, bq, wk, bk, wv, bv, wd, bd, gamma, beta = params

    # Pack operands: 12 -> 6 DMA streams into the kernel.
    w_qkv = jnp.concatenate([wq, wk, wv], axis=1)              # [H, 3H]
    b_qkv = jnp.concatenate([bq, bk, bv], axis=1)              # [1, 3H]
    vecs = jnp.concatenate([bd, gamma, beta], axis=0)          # [3, H]

    hs2d = hidden_states.reshape(B * S, H)                     # single activation slab
    mask2d = attention_mask.reshape(B, S)

    full = lambda shape: pl.BlockSpec(shape, lambda i: (0,) * len(shape))

    out2d = pl.pallas_call(
        albert_attention_kernel,
        out_shape=jax.ShapeDtypeStruct((B * S, H), hidden_states.dtype),
        grid=(1,),                                             # single fused step, no per-batch loop
        in_specs=[
            full((B * S, H)),      # hidden_states
            full((B, S)),          # additive attention mask
            full((H, 3 * H)),      # packed QKV weight
            full((1, 3 * H)),      # packed QKV bias
            full((H, H)),          # dense weight
            full((3, H)),          # dense bias + LN gamma/beta
        ],
        out_specs=full((B * S, H)),
        compiler_params=pltpu.CompilerParams(
            dimension_semantics=("arbitrary",),                # 1-step grid: nothing to shard
        ),
    )(hs2d, mask2d, w_qkv, b_qkv, wd, vecs)

    return out2d.reshape(B, S, H)


# ----------------------------- pure-JAX reference -----------------------------
def albert_attention_ref(hs, mask, params):
    wq, bq, wk, bk, wv, bv, wd, bd, gamma, beta = params
    B, S, H = hs.shape

    def split_heads(x):   # [B, S, H] -> [B, nH, S, d]
        return x.reshape(B, S, NUM_HEADS, HEAD_DIM).transpose(0, 2, 1, 3)

    q = split_heads(hs @ wq + bq)
    k = split_heads(hs @ wk + bk)
    v = split_heads(hs @ wv + bv)
    scores = jnp.einsum("bhqd,bhkd->bhqk", q, k) / math.sqrt(HEAD_DIM)
    scores = scores + mask                                     # [B,1,1,S] broadcast
    probs = jax.nn.softmax(scores, axis=-1)
    ctx = jnp.einsum("bhqk,bhkd->bhqd", probs, v)
    ctx = ctx.transpose(0, 2, 1, 3).reshape(B, S, H)
    proj = ctx @ wd + bd
    x = hs + proj
    mu = jnp.mean(x, axis=-1, keepdims=True)
    var = jnp.mean((x - mu) ** 2, axis=-1, keepdims=True)
    return (x - mu) * jax.lax.rsqrt(var + LN_EPS) * gamma + beta


# ----------------------------- driver -----------------------------
if __name__ == "__main__":
    key = jax.random.PRNGKey(0)
    keys = jax.random.split(key, 8)

    hidden_states = jax.random.normal(keys[0], (BATCH, SEQ, HIDDEN), dtype=jnp.float32)

    # HF-style additive mask: 0 for visible, -10000 for padded tokens
    valid = jnp.ones((BATCH, SEQ), dtype=jnp.float32)
    valid = valid.at[1, SEQ - 2:].set(0.0)  # pad last 2 tokens of batch element 1
    attention_mask = ((1.0 - valid) * -10000.0).reshape(BATCH, 1, 1, SEQ)

    # deterministic parameter init; weights stored as [in, out] (already transposed)
    init = lambda k: (0.02 * jax.random.normal(k, (HIDDEN, HIDDEN))).astype(jnp.float32)
    params = (
        init(keys[1]), jnp.zeros((1, HIDDEN), jnp.float32),   # query
        init(keys[2]), jnp.zeros((1, HIDDEN), jnp.float32),   # key
        init(keys[3]), jnp.zeros((1, HIDDEN), jnp.float32),   # value
        init(keys[4]), jnp.zeros((1, HIDDEN), jnp.float32),   # dense
        jnp.ones((1, HIDDEN), jnp.float32),                   # LayerNorm weight
        jnp.zeros((1, HIDDEN), jnp.float32),                  # LayerNorm bias
    )

    out = albert_attention(hidden_states, attention_mask, params)
    out = jax.block_until_ready(out)

    ref = albert_attention_ref(hidden_states, attention_mask, params)
    assert out.shape == (BATCH, SEQ, HIDDEN)
    assert jnp.allclose(out, ref, atol=1e-4, rtol=1e-4), "mismatch vs pure-JAX reference"

    print("KERNEL_OK")
</pallas_src>

<mosaic_0001>
module attributes {stable_mosaic.version = 11 : i64} {
  func.func @albert_attention_kernel(%arg0: i32, %arg1: memref<16x32xf32, #tpu.memory_space<vmem>>, %arg2: memref<2x8xf32, #tpu.memory_space<vmem>>, %arg3: memref<32x96xf32, #tpu.memory_space<vmem>>, %arg4: memref<1x96xf32, #tpu.memory_space<vmem>>, %arg5: memref<32x32xf32, #tpu.memory_space<vmem>>, %arg6: memref<3x32xf32, #tpu.memory_space<vmem>>, %arg7: memref<16x32xf32, #tpu.memory_space<vmem>>) attributes {dimension_semantics = [#tpu.dimension_semantics<arbitrary>], iteration_bounds = array<i64: 1>, scalar_prefetch = 0 : i64, scratch_operands = 0 : i64, tpu.core_type = #tpu.core_type<tc>, window_params = [{pipeline_mode = #tpu.pipeline_mode<synchronous>, transform_indices = @transform_0, window_bounds = array<i64: 16, 32>}, {pipeline_mode = #tpu.pipeline_mode<synchronous>, transform_indices = @transform_1, window_bounds = array<i64: 2, 8>}, {pipeline_mode = #tpu.pipeline_mode<synchronous>, transform_indices = @transform_2, window_bounds = array<i64: 32, 96>}, {pipeline_mode = #tpu.pipeline_mode<synchronous>, transform_indices = @transform_3, window_bounds = array<i64: 1, 96>}, {pipeline_mode = #tpu.pipeline_mode<synchronous>, transform_indices = @transform_4, window_bounds = array<i64: 32, 32>}, {pipeline_mode = #tpu.pipeline_mode<synchronous>, transform_indices = @transform_5, window_bounds = array<i64: 3, 32>}, {pipeline_mode = #tpu.pipeline_mode<synchronous>, transform_indices = @transform_6, window_bounds = array<i64: 16, 32>}]} {
    %c0 = arith.constant 0 : index
    %c0_0 = arith.constant 0 : index
    %0 = vector.load %arg1[%c0, %c0_0] : memref<16x32xf32, #tpu.memory_space<vmem>>, vector<16x32xf32>
    %c0_1 = arith.constant 0 : index
    %c0_2 = arith.constant 0 : index
    %1 = vector.load %arg2[%c0_1, %c0_2] : memref<2x8xf32, #tpu.memory_space<vmem>>, vector<2x8xf32>
    %c0_3 = arith.constant 0 : index
    %c0_4 = arith.constant 0 : index
    %2 = vector.load %arg3[%c0_3, %c0_4] : memref<32x96xf32, #tpu.memory_space<vmem>>, vector<32x96xf32>
    %cst = arith.constant dense<0.000000e+00> : vector<16x96xf32>
    %3 = tpu.matmul %0, %2, %cst {dimension_numbers = #tpu.dot_dimension_numbers<[1], [0], [0], [1], [0, 0, 1, 1], [], []>} : vector<16x32xf32>, vector<32x96xf32>, vector<16x96xf32> -> vector<16x96xf32>
    %c0_5 = arith.constant 0 : index
    %c0_6 = arith.constant 0 : index
    %4 = vector.load %arg4[%c0_5, %c0_6] : memref<1x96xf32, #tpu.memory_space<vmem>>, vector<1x96xf32>
    %5 = vector.broadcast %4 : vector<1x96xf32> to vector<16x96xf32>
    %6 = arith.addf %3, %5 : vector<16x96xf32>
    %7 = vector.extract_strided_slice %1 {offsets = [0, 0], sizes = [1, 8], strides = [1, 1]} : vector<2x8xf32> to vector<1x8xf32>
    %8 = vector.extract_strided_slice %6 {offsets = [0, 0], sizes = [8, 8], strides = [1, 1]} : vector<16x96xf32> to vector<8x8xf32>
    %9 = vector.extract_strided_slice %6 {offsets = [0, 32], sizes = [8, 8], strides = [1, 1]} : vector<16x96xf32> to vector<8x8xf32>
    %10 = vector.extract_strided_slice %6 {offsets = [0, 64], sizes = [8, 8], strides = [1, 1]} : vector<16x96xf32> to vector<8x8xf32>
    %cst_7 = arith.constant dense<0.000000e+00> : vector<8x8xf32>
    %11 = tpu.matmul %8, %9, %cst_7 {dimension_numbers = #tpu.dot_dimension_numbers<[1], [1], [0], [0], [0, 0, 1, 0], [], []>} : vector<8x8xf32>, vector<8x8xf32>, vector<8x8xf32> -> vector<8x8xf32>
    %cst_8 = arith.constant 0.353553385 : f32
    %12 = vector.broadcast %cst_8 : f32 to vector<8x8xf32>
    %13 = arith.mulf %11, %12 : vector<8x8xf32>
    %14 = vector.broadcast %7 : vector<1x8xf32> to vector<8x8xf32>
    %15 = arith.addf %13, %14 : vector<8x8xf32>
    %cst_9 = arith.constant dense<0xFF800000> : vector<8xf32>
    %16 = vector.multi_reduction <maximumf>, %15, %cst_9 [1] : vector<8x8xf32> to vector<8xf32>
    %17 = vector.shape_cast %16 : vector<8xf32> to vector<8x1xf32>
    %18 = vector.broadcast %17 : vector<8x1xf32> to vector<8x8xf32>
    %19 = arith.subf %15, %18 : vector<8x8xf32>
    %20 = math.exp %19 : vector<8x8xf32>
    %cst_10 = arith.constant dense<0.000000e+00> : vector<8xf32>
    %21 = vector.multi_reduction <add>, %20, %cst_10 [1] : vector<8x8xf32> to vector<8xf32>
    %22 = vector.shape_cast %21 : vector<8xf32> to vector<8x1xf32>
    %23 = tpu.reciprocal %22 : vector<8x1xf32> -> vector<8x1xf32>
    %24 = vector.broadcast %23 : vector<8x1xf32> to vector<8x8xf32>
    %25 = arith.mulf %20, %24 : vector<8x8xf32>
    %cst_11 = arith.constant dense<0.000000e+00> : vector<8x8xf32>
    %26 = tpu.matmul %25, %10, %cst_11 {dimension_numbers = #tpu.dot_dimension_numbers<[1], [0], [0], [1], [0, 0, 1, 1], [], []>} : vector<8x8xf32>, vector<8x8xf32>, vector<8x8xf32> -> vector<8x8xf32>
    %27 = vector.extract_strided_slice %6 {offsets = [0, 8], sizes = [8, 8], strides = [1, 1]} : vector<16x96xf32> to vector<8x8xf32>
    %28 = vector.extract_strided_slice %6 {offsets = [0, 40], sizes = [8, 8], strides = [1, 1]} : vector<16x96xf32> to vector<8x8xf32>
    %29 = vector.extract_strided_slice %6 {offsets = [0, 72], sizes = [8, 8], strides = [1, 1]} : vector<16x96xf32> to vector<8x8xf32>
    %cst_12 = arith.constant dense<0.000000e+00> : vector<8x8xf32>
    %30 = tpu.matmul %27, %28, %cst_12 {dimension_numbers = #tpu.dot_dimension_numbers<[1], [1], [0], [0], [0, 0, 1, 0], [], []>} : vector<8x8xf32>, vector<8x8xf32>, vector<8x8xf32> -> vector<8x8xf32>
    %cst_13 = arith.constant 0.353553385 : f32
    %31 = vector.broadcast %cst_13 : f32 to vector<8x8xf32>
    %32 = arith.mulf %30, %31 : vector<8x8xf32>
    %33 = vector.broadcast %7 : vector<1x8xf32> to vector<8x8xf32>
    %34 = arith.addf %32, %33 : vector<8x8xf32>
    %cst_14 = arith.constant dense<0xFF800000> : vector<8xf32>
    %35 = vector.multi_reduction <maximumf>, %34, %cst_14 [1] : vector<8x8xf32> to vector<8xf32>
    %36 = vector.shape_cast %35 : vector<8xf32> to vector<8x1xf32>
    %37 = vector.broadcast %36 : vector<8x1xf32> to vector<8x8xf32>
    %38 = arith.subf %34, %37 : vector<8x8xf32>
    %39 = math.exp %38 : vector<8x8xf32>
    %cst_15 = arith.constant dense<0.000000e+00> : vector<8xf32>
    %40 = vector.multi_reduction <add>, %39, %cst_15 [1] : vector<8x8xf32> to vector<8xf32>
    %41 = vector.shape_cast %40 : vector<8xf32> to vector<8x1xf32>
    %42 = tpu.reciprocal %41 : vector<8x1xf32> -> vector<8x1xf32>
    %43 = vector.broadcast %42 : vector<8x1xf32> to vector<8x8xf32>
    %44 = arith.mulf %39, %43 : vector<8x8xf32>
    %cst_16 = arith.constant dense<0.000000e+00> : vector<8x8xf32>
    %45 = tpu.matmul %44, %29, %cst_16 {dimension_numbers = #tpu.dot_dimension_numbers<[1], [0], [0], [1], [0, 0, 1, 1], [], []>} : vector<8x8xf32>, vector<8x8xf32>, vector<8x8xf32> -> vector<8x8xf32>
    %46 = vector.extract_strided_slice %6 {offsets = [0, 16], sizes = [8, 8], strides = [1, 1]} : vector<16x96xf32> to vector<8x8xf32>
    %47 = vector.extract_strided_slice %6 {offsets = [0, 48], sizes = [8, 8], strides = [1, 1]} : vector<16x96xf32> to vector<8x8xf32>
    %48 = vector.extract_strided_slice %6 {offsets = [0, 80], sizes = [8, 8], strides = [1, 1]} : vector<16x96xf32> to vector<8x8xf32>
    %cst_17 = arith.constant dense<0.000000e+00> : vector<8x8xf32>
    %49 = tpu.matmul %46, %47, %cst_17 {dimension_numbers = #tpu.dot_dimension_numbers<[1], [1], [0], [0], [0, 0, 1, 0], [], []>} : vector<8x8xf32>, vector<8x8xf32>, vector<8x8xf32> -> vector<8x8xf32>
    %cst_18 = arith.constant 0.353553385 : f32
    %50 = vector.broadcast %cst_18 : f32 to vector<8x8xf32>
    %51 = arith.mulf %49, %50 : vector<8x8xf32>
    %52 = vector.broadcast %7 : vector<1x8xf32> to vector<8x8xf32>
    %53 = arith.addf %51, %52 : vector<8x8xf32>
    %cst_19 = arith.constant dense<0xFF800000> : vector<8xf32>
    %54 = vector.multi_reduction <maximumf>, %53, %cst_19 [1] : vector<8x8xf32> to vector<8xf32>
    %55 = vector.shape_cast %54 : vector<8xf32> to vector<8x1xf32>
    %56 = vector.broadcast %55 : vector<8x1xf32> to vector<8x8xf32>
    %57 = arith.subf %53, %56 : vector<8x8xf32>
    %58 = math.exp %57 : vector<8x8xf32>
    %cst_20 = arith.constant dense<0.000000e+00> : vector<8xf32>
    %59 = vector.multi_reduction <add>, %58, %cst_20 [1] : vector<8x8xf32> to vector<8xf32>
    %60 = vector.shape_cast %59 : vector<8xf32> to vector<8x1xf32>
    %61 = tpu.reciprocal %60 : vector<8x1xf32> -> vector<8x1xf32>
    %62 = vector.broadcast %61 : vector<8x1xf32> to vector<8x8xf32>
    %63 = arith.mulf %58, %62 : vector<8x8xf32>
    %cst_21 = arith.constant dense<0.000000e+00> : vector<8x8xf32>
    %64 = tpu.matmul %63, %48, %cst_21 {dimension_numbers = #tpu.dot_dimension_numbers<[1], [0], [0], [1], [0, 0, 1, 1], [], []>} : vector<8x8xf32>, vector<8x8xf32>, vector<8x8xf32> -> vector<8x8xf32>
    %65 = vector.extract_strided_slice %6 {offsets = [0, 24], sizes = [8, 8], strides = [1, 1]} : vector<16x96xf32> to vector<8x8xf32>
    %66 = vector.extract_strided_slice %6 {offsets = [0, 56], sizes = [8, 8], strides = [1, 1]} : vector<16x96xf32> to vector<8x8xf32>
    %67 = vector.extract_strided_slice %6 {offsets = [0, 88], sizes = [8, 8], strides = [1, 1]} : vector<16x96xf32> to vector<8x8xf32>
    %cst_22 = arith.constant dense<0.000000e+00> : vector<8x8xf32>
    %68 = tpu.matmul %65, %66, %cst_22 {dimension_numbers = #tpu.dot_dimension_numbers<[1], [1], [0], [0], [0, 0, 1, 0], [], []>} : vector<8x8xf32>, vector<8x8xf32>, vector<8x8xf32> -> vector<8x8xf32>
    %cst_23 = arith.constant 0.353553385 : f32
    %69 = vector.broadcast %cst_23 : f32 to vector<8x8xf32>
    %70 = arith.mulf %68, %69 : vector<8x8xf32>
    %71 = vector.broadcast %7 : vector<1x8xf32> to vector<8x8xf32>
    %72 = arith.addf %70, %71 : vector<8x8xf32>
    %cst_24 = arith.constant dense<0xFF800000> : vector<8xf32>
    %73 = vector.multi_reduction <maximumf>, %72, %cst_24 [1] : vector<8x8xf32> to vector<8xf32>
    %74 = vector.shape_cast %73 : vector<8xf32> to vector<8x1xf32>
    %75 = vector.broadcast %74 : vector<8x1xf32> to vector<8x8xf32>
    %76 = arith.subf %72, %75 : vector<8x8xf32>
    %77 = math.exp %76 : vector<8x8xf32>
    %cst_25 = arith.constant dense<0.000000e+00> : vector<8xf32>
    %78 = vector.multi_reduction <add>, %77, %cst_25 [1] : vector<8x8xf32> to vector<8xf32>
    %79 = vector.shape_cast %78 : vector<8xf32> to vector<8x1xf32>
    %80 = tpu.reciprocal %79 : vector<8x1xf32> -> vector<8x1xf32>
    %81 = vector.broadcast %80 : vector<8x1xf32> to vector<8x8xf32>
    %82 = arith.mulf %77, %81 : vector<8x8xf32>
    %cst_26 = arith.constant dense<0.000000e+00> : vector<8x8xf32>
    %83 = tpu.matmul %82, %67, %cst_26 {dimension_numbers = #tpu.dot_dimension_numbers<[1], [0], [0], [1], [0, 0, 1, 1], [], []>} : vector<8x8xf32>, vector<8x8xf32>, vector<8x8xf32> -> vector<8x8xf32>
    %84 = tpu.concatenate %26, %45, %64, %83 in 1 : vector<8x8xf32>, vector<8x8xf32>, vector<8x8xf32>, vector<8x8xf32> -> vector<8x32xf32>
    %85 = vector.extract_strided_slice %1 {offsets = [1, 0], sizes = [1, 8], strides = [1, 1]} : vector<2x8xf32> to vector<1x8xf32>
    %86 = vector.extract_strided_slice %6 {offsets = [8, 0], sizes = [8, 8], strides = [1, 1]} : vector<16x96xf32> to vector<8x8xf32>
    %87 = vector.extract_strided_slice %6 {offsets = [8, 32], sizes = [8, 8], strides = [1, 1]} : vector<16x96xf32> to vector<8x8xf32>
    %88 = vector.extract_strided_slice %6 {offsets = [8, 64], sizes = [8, 8], strides = [1, 1]} : vector<16x96xf32> to vector<8x8xf32>
    %cst_27 = arith.constant dense<0.000000e+00> : vector<8x8xf32>
    %89 = tpu.matmul %86, %87, %cst_27 {dimension_numbers = #tpu.dot_dimension_numbers<[1], [1], [0], [0], [0, 0, 1, 0], [], []>} : vector<8x8xf32>, vector<8x8xf32>, vector<8x8xf32> -> vector<8x8xf32>
    %cst_28 = arith.constant 0.353553385 : f32
    %90 = vector.broadcast %cst_28 : f32 to vector<8x8xf32>
    %91 = arith.mulf %89, %90 : vector<8x8xf32>
    %92 = vector.broadcast %85 : vector<1x8xf32> to vector<8x8xf32>
    %93 = arith.addf %91, %92 : vector<8x8xf32>
    %cst_29 = arith.constant dense<0xFF800000> : vector<8xf32>
    %94 = vector.multi_reduction <maximumf>, %93, %cst_29 [1] : vector<8x8xf32> to vector<8xf32>
    %95 = vector.shape_cast %94 : vector<8xf32> to vector<8x1xf32>
    %96 = vector.broadcast %95 : vector<8x1xf32> to vector<8x8xf32>
    %97 = arith.subf %93, %96 : vector<8x8xf32>
    %98 = math.exp %97 : vector<8x8xf32>
    %cst_30 = arith.constant dense<0.000000e+00> : vector<8xf32>
    %99 = vector.multi_reduction <add>, %98, %cst_30 [1] : vector<8x8xf32> to vector<8xf32>
    %100 = vector.shape_cast %99 : vector<8xf32> to vector<8x1xf32>
    %101 = tpu.reciprocal %100 : vector<8x1xf32> -> vector<8x1xf32>
    %102 = vector.broadcast %101 : vector<8x1xf32> to vector<8x8xf32>
    %103 = arith.mulf %98, %102 : vector<8x8xf32>
    %cst_31 = arith.constant dense<0.000000e+00> : vector<8x8xf32>
    %104 = tpu.matmul %103, %88, %cst_31 {dimension_numbers = #tpu.dot_dimension_numbers<[1], [0], [0], [1], [0, 0, 1, 1], [], []>} : vector<8x8xf32>, vector<8x8xf32>, vector<8x8xf32> -> vector<8x8xf32>
    %105 = vector.extract_strided_slice %6 {offsets = [8, 8], sizes = [8, 8], strides = [1, 1]} : vector<16x96xf32> to vector<8x8xf32>
    %106 = vector.extract_strided_slice %6 {offsets = [8, 40], sizes = [8, 8], strides = [1, 1]} : vector<16x96xf32> to vector<8x8xf32>
    %107 = vector.extract_strided_slice %6 {offsets = [8, 72], sizes = [8, 8], strides = [1, 1]} : vector<16x96xf32> to vector<8x8xf32>
    %cst_32 = arith.constant dense<0.000000e+00> : vector<8x8xf32>
    %108 = tpu.matmul %105, %106, %cst_32 {dimension_numbers = #tpu.dot_dimension_numbers<[1], [1], [0], [0], [0, 0, 1, 0], [], []>} : vector<8x8xf32>, vector<8x8xf32>, vector<8x8xf32> -> vector<8x8xf32>
    %cst_33 = arith.constant 0.353553385 : f32
    %109 = vector.broadcast %cst_33 : f32 to vector<8x8xf32>
    %110 = arith.mulf %108, %109 : vector<8x8xf32>
    %111 = vector.broadcast %85 : vector<1x8xf32> to vector<8x8xf32>
    %112 = arith.addf %110, %111 : vector<8x8xf32>
    %cst_34 = arith.constant dense<0xFF800000> : vector<8xf32>
    %113 = vector.multi_reduction <maximumf>, %112, %cst_34 [1] : vector<8x8xf32> to vector<8xf32>
    %114 = vector.shape_cast %113 : vector<8xf32> to vector<8x1xf32>
    %115 = vector.broadcast %114 : vector<8x1xf32> to vector<8x8xf32>
    %116 = arith.subf %112, %115 : vector<8x8xf32>
    %117 = math.exp %116 : vector<8x8xf32>
    %cst_35 = arith.constant dense<0.000000e+00> : vector<8xf32>
    %118 = vector.multi_reduction <add>, %117, %cst_35 [1] : vector<8x8xf32> to vector<8xf32>
    %119 = vector.shape_cast %118 : vector<8xf32> to vector<8x1xf32>
    %120 = tpu.reciprocal %119 : vector<8x1xf32> -> vector<8x1xf32>
    %121 = vector.broadcast %120 : vector<8x1xf32> to vector<8x8xf32>
    %122 = arith.mulf %117, %121 : vector<8x8xf32>
    %cst_36 = arith.constant dense<0.000000e+00> : vector<8x8xf32>
    %123 = tpu.matmul %122, %107, %cst_36 {dimension_numbers = #tpu.dot_dimension_numbers<[1], [0], [0], [1], [0, 0, 1, 1], [], []>} : vector<8x8xf32>, vector<8x8xf32>, vector<8x8xf32> -> vector<8x8xf32>
    %124 = vector.extract_strided_slice %6 {offsets = [8, 16], sizes = [8, 8], strides = [1, 1]} : vector<16x96xf32> to vector<8x8xf32>
    %125 = vector.extract_strided_slice %6 {offsets = [8, 48], sizes = [8, 8], strides = [1, 1]} : vector<16x96xf32> to vector<8x8xf32>
    %126 = vector.extract_strided_slice %6 {offsets = [8, 80], sizes = [8, 8], strides = [1, 1]} : vector<16x96xf32> to vector<8x8xf32>
    %cst_37 = arith.constant dense<0.000000e+00> : vector<8x8xf32>
    %127 = tpu.matmul %124, %125, %cst_37 {dimension_numbers = #tpu.dot_dimension_numbers<[1], [1], [0], [0], [0, 0, 1, 0], [], []>} : vector<8x8xf32>, vector<8x8xf32>, vector<8x8xf32> -> vector<8x8xf32>
    %cst_38 = arith.constant 0.353553385 : f32
    %128 = vector.broadcast %cst_38 : f32 to vector<8x8xf32>
    %129 = arith.mulf %127, %128 : vector<8x8xf32>
    %130 = vector.broadcast %85 : vector<1x8xf32> to vector<8x8xf32>
    %131 = arith.addf %129, %130 : vector<8x8xf32>
    %cst_39 = arith.constant dense<0xFF800000> : vector<8xf32>
    %132 = vector.multi_reduction <maximumf>, %131, %cst_39 [1] : vector<8x8xf32> to vector<8xf32>
    %133 = vector.shape_cast %132 : vector<8xf32> to vector<8x1xf32>
    %134 = vector.broadcast %133 : vector<8x1xf32> to vector<8x8xf32>
    %135 = arith.subf %131, %134 : vector<8x8xf32>
    %136 = math.exp %135 : vector<8x8xf32>
    %cst_40 = arith.constant dense<0.000000e+00> : vector<8xf32>
    %137 = vector.multi_reduction <add>, %136, %cst_40 [1] : vector<8x8xf32> to vector<8xf32>
    %138 = vector.shape_cast %137 : vector<8xf32> to vector<8x1xf32>
    %139 = tpu.reciprocal %138 : vector<8x1xf32> -> vector<8x1xf32>
    %140 = vector.broadcast %139 : vector<8x1xf32> to vector<8x8xf32>
    %141 = arith.mulf %136, %140 : vector<8x8xf32>
    %cst_41 = arith.constant dense<0.000000e+00> : vector<8x8xf32>
    %142 = tpu.matmul %141, %126, %cst_41 {dimension_numbers = #tpu.dot_dimension_numbers<[1], [0], [0], [1], [0, 0, 1, 1], [], []>} : vector<8x8xf32>, vector<8x8xf32>, vector<8x8xf32> -> vector<8x8xf32>
    %143 = vector.extract_strided_slice %6 {offsets = [8, 24], sizes = [8, 8], strides = [1, 1]} : vector<16x96xf32> to vector<8x8xf32>
    %144 = vector.extract_strided_slice %6 {offsets = [8, 56], sizes = [8, 8], strides = [1, 1]} : vector<16x96xf32> to vector<8x8xf32>
    %145 = vector.extract_strided_slice %6 {offsets = [8, 88], sizes = [8, 8], strides = [1, 1]} : vector<16x96xf32> to vector<8x8xf32>
    %cst_42 = arith.constant dense<0.000000e+00> : vector<8x8xf32>
    %146 = tpu.matmul %143, %144, %cst_42 {dimension_numbers = #tpu.dot_dimension_numbers<[1], [1], [0], [0], [0, 0, 1, 0], [], []>} : vector<8x8xf32>, vector<8x8xf32>, vector<8x8xf32> -> vector<8x8xf32>
    %cst_43 = arith.constant 0.353553385 : f32
    %147 = vector.broadcast %cst_43 : f32 to vector<8x8xf32>
    %148 = arith.mulf %146, %147 : vector<8x8xf32>
    %149 = vector.broadcast %85 : vector<1x8xf32> to vector<8x8xf32>
    %150 = arith.addf %148, %149 : vector<8x8xf32>
    %cst_44 = arith.constant dense<0xFF800000> : vector<8xf32>
    %151 = vector.multi_reduction <maximumf>, %150, %cst_44 [1] : vector<8x8xf32> to vector<8xf32>
    %152 = vector.shape_cast %151 : vector<8xf32> to vector<8x1xf32>
    %153 = vector.broadcast %152 : vector<8x1xf32> to vector<8x8xf32>
    %154 = arith.subf %150, %153 : vector<8x8xf32>
    %155 = math.exp %154 : vector<8x8xf32>
    %cst_45 = arith.constant dense<0.000000e+00> : vector<8xf32>
    %156 = vector.multi_reduction <add>, %155, %cst_45 [1] : vector<8x8xf32> to vector<8xf32>
    %157 = vector.shape_cast %156 : vector<8xf32> to vector<8x1xf32>
    %158 = tpu.reciprocal %157 : vector<8x1xf32> -> vector<8x1xf32>
    %159 = vector.broadcast %158 : vector<8x1xf32> to vector<8x8xf32>
    %160 = arith.mulf %155, %159 : vector<8x8xf32>
    %cst_46 = arith.constant dense<0.000000e+00> : vector<8x8xf32>
    %161 = tpu.matmul %160, %145, %cst_46 {dimension_numbers = #tpu.dot_dimension_numbers<[1], [0], [0], [1], [0, 0, 1, 1], [], []>} : vector<8x8xf32>, vector<8x8xf32>, vector<8x8xf32> -> vector<8x8xf32>
    %162 = tpu.concatenate %104, %123, %142, %161 in 1 : vector<8x8xf32>, vector<8x8xf32>, vector<8x8xf32>, vector<8x8xf32> -> vector<8x32xf32>
    %163 = tpu.concatenate %84, %162 in 0 : vector<8x32xf32>, vector<8x32xf32> -> vector<16x32xf32>
    %c0_47 = arith.constant 0 : index
    %c0_48 = arith.constant 0 : index
    %164 = vector.load %arg6[%c0_47, %c0_48] : memref<3x32xf32, #tpu.memory_space<vmem>>, vector<3x32xf32>
    %165 = vector.extract_strided_slice %164 {offsets = [0, 0], sizes = [1, 32], strides = [1, 1]} : vector<3x32xf32> to vector<1x32xf32>
    %166 = vector.extract_strided_slice %164 {offsets = [1, 0], sizes = [1, 32], strides = [1, 1]} : vector<3x32xf32> to vector<1x32xf32>
    %167 = vector.extract_strided_slice %164 {offsets = [2, 0], sizes = [1, 32], strides = [1, 1]} : vector<3x32xf32> to vector<1x32xf32>
    %c0_49 = arith.constant 0 : index
    %c0_50 = arith.constant 0 : index
    %168 = vector.load %arg5[%c0_49, %c0_50] : memref<32x32xf32, #tpu.memory_space<vmem>>, vector<32x32xf32>
    %cst_51 = arith.constant dense<0.000000e+00> : vector<16x32xf32>
    %169 = tpu.matmul %163, %168, %cst_51 {dimension_numbers = #tpu.dot_dimension_numbers<[1], [0], [0], [1], [0, 0, 1, 1], [], []>} : vector<16x32xf32>, vector<32x32xf32>, vector<16x32xf32> -> vector<16x32xf32>
    %170 = vector.broadcast %165 : vector<1x32xf32> to vector<16x32xf32>
    %171 = arith.addf %169, %170 : vector<16x32xf32>
    %172 = arith.addf %0, %171 : vector<16x32xf32>
    %cst_52 = arith.constant dense<0.000000e+00> : vector<16xf32>
    %173 = vector.multi_reduction <add>, %172, %cst_52 [1] : vector<16x32xf32> to vector<16xf32>
    %174 = vector.shape_cast %173 : vector<16xf32> to vector<16x1xf32>
    %cst_53 = arith.constant 3.200000e+01 : f32
    %175 = vector.broadcast %cst_53 : f32 to vector<16x1xf32>
    %176 = arith.divf %174, %175 : vector<16x1xf32>
    %177 = vector.broadcast %176 : vector<16x1xf32> to vector<16x32xf32>
    %178 = arith.subf %172, %177 : vector<16x32xf32>
    %179 = vector.broadcast %176 : vector<16x1xf32> to vector<16x32xf32>
    %180 = arith.subf %172, %179 : vector<16x32xf32>
    %181 = arith.mulf %178, %180 : vector<16x32xf32>
    %cst_54 = arith.constant dense<0.000000e+00> : vector<16xf32>
    %182 = vector.multi_reduction <add>, %181, %cst_54 [1] : vector<16x32xf32> to vector<16xf32>
    %183 = vector.shape_cast %182 : vector<16xf32> to vector<16x1xf32>
    %cst_55 = arith.constant 3.200000e+01 : f32
    %184 = vector.broadcast %cst_55 : f32 to vector<16x1xf32>
    %185 = arith.divf %183, %184 : vector<16x1xf32>
    %186 = vector.broadcast %176 : vector<16x1xf32> to vector<16x32xf32>
    %187 = arith.subf %172, %186 : vector<16x32xf32>
    %cst_56 = arith.constant 9.99999996E-13 : f32
    %188 = vector.broadcast %cst_56 : f32 to vector<16x1xf32>
    %189 = arith.addf %185, %188 : vector<16x1xf32>
    %190 = math.rsqrt %189 : vector<16x1xf32>
    %191 = vector.broadcast %190 : vector<16x1xf32> to vector<16x32xf32>
    %192 = arith.mulf %187, %191 : vector<16x32xf32>
    %193 = vector.broadcast %166 : vector<1x32xf32> to vector<16x32xf32>
    %194 = arith.mulf %192, %193 : vector<16x32xf32>
    %195 = vector.broadcast %167 : vector<1x32xf32> to vector<16x32xf32>
    %196 = arith.addf %194, %195 : vector<16x32xf32>
    %c0_57 = arith.constant 0 : index
    %c0_58 = arith.constant 0 : index
    %197 = vector.load %arg7[%c0_57, %c0_58] : memref<16x32xf32, #tpu.memory_space<vmem>>, vector<16x32xf32>
    tpu.vector_store %arg7[%c0_57, %c0_58], %196 {strides = array<i32>} : memref<16x32xf32, #tpu.memory_space<vmem>>, vector<16x32xf32>,
    return
  }
  func.func @transform_0(%arg0: i32) -> (i32, i32) {
    %c0_i32 = arith.constant 0 : i32
    %c0_i32_0 = arith.constant 0 : i32
    %c0_i32_1 = arith.constant 0 : i32
    return %c0_i32, %c0_i32_0 : i32, i32
  }
  func.func @transform_1(%arg0: i32) -> (i32, i32) {
    %c0_i32 = arith.constant 0 : i32
    %c0_i32_0 = arith.constant 0 : i32
    %c0_i32_1 = arith.constant 0 : i32
    return %c0_i32, %c0_i32_0 : i32, i32
  }
  func.func @transform_2(%arg0: i32) -> (i32, i32) {
    %c0_i32 = arith.constant 0 : i32
    %c0_i32_0 = arith.constant 0 : i32
    %c0_i32_1 = arith.constant 0 : i32
    return %c0_i32, %c0_i32_0 : i32, i32
  }
  func.func @transform_3(%arg0: i32) -> (i32, i32) {
    %c0_i32 = arith.constant 0 : i32
    %c0_i32_0 = arith.constant 0 : i32
    %c0_i32_1 = arith.constant 0 : i32
    return %c0_i32, %c0_i32_0 : i32, i32
  }
  func.func @transform_4(%arg0: i32) -> (i32, i32) {
    %c0_i32 = arith.constant 0 : i32
    %c0_i32_0 = arith.constant 0 : i32
    %c0_i32_1 = arith.constant 0 : i32
    return %c0_i32, %c0_i32_0 : i32, i32
  }
  func.func @transform_5(%arg0: i32) -> (i32, i32) {
    %c0_i32 = arith.constant 0 : i32
    %c0_i32_0 = arith.constant 0 : i32
    %c0_i32_1 = arith.constant 0 : i32
    return %c0_i32, %c0_i32_0 : i32, i32
  }
  func.func @transform_6(%arg0: i32) -> (i32, i32) {
    %c0_i32 = arith.constant 0 : i32
    %c0_i32_0 = arith.constant 0 : i32
    %c0_i32_1 = arith.constant 0 : i32
    return %c0_i32, %c0_i32_0 : i32, i32
  }
}

</mosaic_0001>

<llo_original>
// kernel: tpu_custom_call.1
$region0: #{tpu_custom_call.1}
  #allocation0 [shape = 'u32[]', space=smem, size = 0x4, offset = 0x4, fixed_abs, tag = 'smem constant byte address 0x4 - core index']
  #allocation1 [shape = 'u32[144,128]{1,0:T(1,128)}', space=vmem, size = 0x12000, scoped, tag = 'internal scratch']
  %s0 = inlined_call_operand.hbm [shape: f32[16,32], index: 0, kind: input, shape index: {}]
  %s1 = inlined_call_operand.vmem [shape: f32[2,8], index: 1, kind: input, shape index: {}]
  %s2 = inlined_call_operand.hbm [shape: f32[32,96], index: 2, kind: input, shape index: {}]
  %s3 = inlined_call_operand.vmem [shape: f32[1,96], index: 3, kind: input, shape index: {}]
  %s4 = inlined_call_operand.hbm [shape: f32[32,32], index: 4, kind: input, shape index: {}]
  %s5 = inlined_call_operand.vmem [shape: f32[3,32], index: 5, kind: input, shape index: {}]
  %s6 = inlined_call_operand.hbm [shape: f32[16,32], index: 6, kind: output, shape index: {}]
  %s7 = sld [smem:[#allocation0]]
  $region46: #{tpu_custom_call.1} parent=0
    _
  %s9 = ssub.s32 1, %s7
  %s10 = scalar_select 0, %s9, %s7
  $region1: #{tpu_custom_call.1} parent=0
    #allocation2 [shape = 'u8[8192]{0}', space=vmem, size = 0x2000, scoped, tag = 'input window, operand 0, single buffered']
    #allocation3 [shape = 's32[1]{0}', space=sflag, size = 0x4, scoped, tag = 'scoped memory for tpu_custom_call.1']
    #allocation4 [shape = 's32[1]{0}', space=sflag, size = 0x4, scoped, tag = 'scoped memory for tpu_custom_call.1']
    #allocation5 [shape = 'u8[16384]{0}', space=vmem, size = 0x4000, scoped, tag = 'input window, operand 2, single buffered']
    #allocation6 [shape = 's32[1]{0}', space=sflag, size = 0x4, scoped, tag = 'scoped memory for tpu_custom_call.1']
    #allocation7 [shape = 'u8[16384]{0}', space=vmem, size = 0x4000, scoped, tag = 'input window, operand 4, single buffered']
    #allocation8 [shape = 'u8[8192]{0}', space=vmem, size = 0x2000, scoped, tag = 'output window, operand 0, single buffered']
    %11 = vsyncpa [#allocation3], 0
    %12 = vsyncpa [#allocation6], 0
    %13 = vsyncpa [#allocation4], 0
    // Predicated region
    $region2: #{tpu_custom_call.1} parent=1 // pred_check
      _
    $region3: #{tpu_custom_call.1} parent=1 // pred_check_branch
      %15 = sbr.rel (0) target = $region5
    $region4: #{tpu_custom_call.1} parent=1 // pred_region
      %s17 = ssub.s32 256, 256
      %18 = vsyncadd [#allocation3], %s17
      %s19 = sshll.u32 [#allocation2], 4
      %s20 = int_to_ptr.vmem [resolvable:$true] %s19
      %25 = dma.hbm_to_vmem [thread:$0]  %s0, 256, %s20, [#allocation3], 128, 128, 8
    $region5: #{tpu_custom_call.1} parent=1 // pred_fallthru
      _
    // Predicated region
    $region6: #{tpu_custom_call.1} parent=1 // pred_check
      _
    $region7: #{tpu_custom_call.1} parent=1 // pred_check_branch
      %27 = sbr.rel (0) target = $region9
    $region8: #{tpu_custom_call.1} parent=1 // pred_region
      _
    $region9: #{tpu_custom_call.1} parent=1 // pred_fallthru
      _
    // Predicated region
    $region10: #{tpu_custom_call.1} parent=1 // pred_check
      _
    $region11: #{tpu_custom_call.1} parent=1 // pred_check_branch
      %29 = sbr.rel (0) target = $region13
    $region12: #{tpu_custom_call.1} parent=1 // pred_region
      %s31 = ssub.s32 512, 512
      %32 = vsyncadd [#allocation6], %s31
      %s33 = sshll.u32 [#allocation5], 4
      %s34 = int_to_ptr.vmem [resolvable:$true] %s33
      %39 = dma.hbm_to_vmem [thread:$0]  %s2, 512, %s34, [#allocation6], 128, 128, 8
    $region13: #{tpu_custom_call.1} parent=1 // pred_fallthru
      _
    // Predicated region
    $region14: #{tpu_custom_call.1} parent=1 // pred_check
      _
    $region15: #{tpu_custom_call.1} parent=1 // pred_check_branch
      %41 = sbr.rel (0) target = $region17
    $region16: #{tpu_custom_call.1} parent=1 // pred_region
      _
    $region17: #{tpu_custom_call.1} parent=1 // pred_fallthru
      _
    // Predicated region
    $region18: #{tpu_custom_call.1} parent=1 // pred_check
      _
    $region19: #{tpu_custom_call.1} parent=1 // pred_check_branch
      %43 = sbr.rel (0) target = $region21
    $region20: #{tpu_custom_call.1} parent=1 // pred_region
      %s45 = ssub.s32 512, 512
      %46 = vsyncadd [#allocation6], %s45
      %s47 = sshll.u32 [#allocation7], 4
      %s48 = int_to_ptr.vmem [resolvable:$true] %s47
      %53 = dma.hbm_to_vmem [thread:$0]  %s4, 512, %s48, [#allocation6], 128, 128, 8
    $region21: #{tpu_custom_call.1} parent=1 // pred_fallthru
      _
    // Predicated region
    $region22: #{tpu_custom_call.1} parent=1 // pred_check
      _
    $region23: #{tpu_custom_call.1} parent=1 // pred_check_branch
      %55 = sbr.rel (0) target = $region25
    $region24: #{tpu_custom_call.1} parent=1 // pred_region
      _
    $region25: #{tpu_custom_call.1} parent=1 // pred_fallthru
      _
    // Predicated region
    $region26: #{tpu_custom_call.1} parent=1 // pred_check
      _
    $region27: #{tpu_custom_call.1} parent=1 // pred_check_branch
      %57 = sbr.rel (0) target = $region29
    $region28: #{tpu_custom_call.1} parent=1 // pred_region
      %58 = dma.done [#allocation3], 256
    $region29: #{tpu_custom_call.1} parent=1 // pred_fallthru
      _
    // Predicated region
    $region30: #{tpu_custom_call.1} parent=1 // pred_check
      _
    $region31: #{tpu_custom_call.1} parent=1 // pred_check_branch
      %60 = sbr.rel (0) target = $region33
    $region32: #{tpu_custom_call.1} parent=1 // pred_region
      %61 = dma.done [#allocation6], 512
    $region33: #{tpu_custom_call.1} parent=1 // pred_fallthru
      _
    // Predicated region
    $region34: #{tpu_custom_call.1} parent=1 // pred_check
      _
    $region35: #{tpu_custom_call.1} parent=1 // pred_check_branch
      %63 = sbr.rel (0) target = $region37
    $region36: #{tpu_custom_call.1} parent=1 // pred_region
      %64 = dma.done [#allocation6], 512
    $region37: #{tpu_custom_call.1} parent=1 // pred_fallthru
      _
    %v65 = vld [vmem:[#allocation2] sm:$0xff]
    %v66 = vld [vmem:[#allocation2 + $0x8] sm:$0xff]
    %v67 = vld [vmem:[%s1] sm:$0x3]
    %v68 = vld [vmem:[#allocation5] sm:$0xff]
    %v69 = vld [vmem:[#allocation5 + $0x8] sm:$0xff]
    %v70 = vld [vmem:[#allocation5 + $0x10] sm:$0xff]
    %v71 = vld [vmem:[#allocation5 + $0x18] sm:$0xff]
    %v72 = vld [vmem:[%s3] sm:$0x1]
    %v74 = vlaneseq
    %v75 = vshrl.u32 %v74, 7
    %v76 = vsub.s32 0, %v75
    %v77 = vrot.slane %v72, %v76
    %vm79 = vcmask 261120
    %v81 = vsel %vm79, %v65, 0
    %v84 = vsel %vm79, %v66, 0
    %86 = vmatprep.subr.mxu0 0.0
    %87 = vmatpush1.msra.mxu0 %v68
    %88 = vmatprep.subr.mxu0 0.0
    %89 = vmatpush1.msra.mxu0 %v69
    %90 = vmatprep.subr.mxu0 0.0
    %91 = vmatpush1.msra.mxu0 %v70
    %92 = vmatprep.subr.mxu0 0.0
    %93 = vmatpush1.msra.mxu0 %v71
    %94 = vmatprep.subr.mxu0 0.0
    %95 = vmatpush1.msra.mxu0 0.0
    %96 = vmatprep.subr.mxu0 0.0
    %97 = vmatpush1.msra.mxu0 0.0
    %98 = vmatprep.subr.mxu0 0.0
    %99 = vmatpush1.msra.mxu0 0.0
    %100 = vmatprep.subr.mxu0 0.0
    %101 = vmatpush1.msra.mxu0 0.0
    %102 = vmatprep.subr.mxu0 0.0
    %103 = vmatpush1.msra.mxu0 0.0
    %104 = vmatprep.subr.mxu0 0.0
    %105 = vmatpush1.msra.mxu0 0.0
    %106 = vmatprep.subr.mxu0 0.0
    %107 = vmatpush1.msra.mxu0 0.0
    %108 = vmatprep.subr.mxu0 0.0
    %109 = vmatpush1.msra.mxu0 0.0
    %110 = vmatprep.subr.mxu0 0.0
    %111 = vmatpush1.msra.mxu0 0.0
    %112 = vmatprep.subr.mxu0 0.0
    %113 = vmatpush1.msra.mxu0 0.0
    %114 = vmatprep.subr.mxu0 0.0
    %115 = vmatpush1.msra.mxu0 0.0
    %116 = vmatprep.subr.mxu0 0.0
    %117 = vmatpush1.msra.mxu0 0.0
    %118 = vmatprep.subr.mxu0 0.0
    %119 = vmatpush1.msra.mxu0 0.0
    %120 = vmatprep.subr.mxu0 0.0
    %121 = vmatpush1.msra.mxu0 0.0
    %122 = vmatprep.subr.mxu0 0.0
    %123 = vmatpush1.msra.mxu0 0.0
    %124 = vmatprep.subr.mxu0 0.0
    %125 = vmatpush1.msra.mxu0 0.0
    %126 = vmatprep.subr.mxu0 0.0
    %127 = vmatpush1.msra.mxu0 0.0
    %128 = vmatprep.subr.mxu0 0.0
    %129 = vmatpush1.msra.mxu0 0.0
    %130 = vmatprep.subr.mxu0 0.0
    %131 = vmatpush1.msra.mxu0 0.0
    %132 = vmatprep.subr.mxu0 0.0
    %133 = vmatpush1.msra.mxu0 0.0
    %134 = vmatprep.subr.mxu0 0.0
    %135 = vmatpush1.msra.mxu0 0.0
    %136 = vmatprep.subr.mxu0 0.0
    %137 = vmatpush1.msra.mxu0 0.0
    %138 = vmatprep.subr.mxu0 0.0
    %139 = vmatpush1.msra.mxu0 0.0
    %140 = vmatprep.subr.mxu0 0.0
    %141 = vmatpush1.msra.mxu0 0.0
    %142 = vmatprep.subr.mxu0 0.0
    %143 = vmatpush1.msra.mxu0 0.0
    %144 = vmatprep.subr.mxu0 0.0
    %145 = vmatpush1.msra.mxu0 0.0
    %146 = vmatprep.subr.mxu0 0.0
    %147 = vmatpush1.msra.mxu0 0.0
    %148 = vmatprep.subr.mxu0 0.0
    %149 = vmatpush1.msra.mxu0 0.0
    %150 = vmatprep.mubr.f32.mxu0 0.0
    %151 = vmatmul.mubr.f32.gmra.mrb[0].mxu0 %v81
    %v152 = vpop.f32.mrb[0].mxu0
    %v153 = vadd.f32 %v77, %v152
    %v154 = vpop.f32.mrb[0].mxu0
    %155 = vmatprep.mubr.f32.mxu0 0.0
    %156 = vmatmul.mubr.f32.gmra.mrb[0].mxu0 %v84
    %v157 = vpop.f32.mrb[0].mxu0
    %v158 = vadd.f32 %v77, %v157
    %v159 = vpop.f32.mrb[0].mxu0
    %160 = vdwg.mxu0
    %162 = vrot.lane.b32.xlu0 %v153, 96
    %v163 = vpop.permute.xlu0 %162
    %vm164 = vcmask 64512
    %v165 = vsel %vm164, %v153, 0
    %v167 = vsel %vm164, %v163, 0
    %169 = vmatprep.subr.mxu0 0.0
    %170 = vmatpush1.xpose.msra.mxu0 %v167
    %171 = vmatprep.subr.mxu0 0.0
    %172 = vmatpush1.xpose.msra.mxu0 0.0
    %173 = vmatprep.subr.mxu0 0.0
    %174 = vmatpush1.xpose.msra.mxu0 0.0
    %175 = vmatprep.subr.mxu0 0.0
    %176 = vmatpush1.xpose.msra.mxu0 0.0
    %177 = vmatprep.subr.mxu0 0.0
    %178 = vmatpush1.xpose.msra.mxu0 0.0
    %179 = vmatprep.subr.mxu0 0.0
    %180 = vmatpush1.xpose.msra.mxu0 0.0
    %181 = vmatprep.subr.mxu0 0.0
    %182 = vmatpush1.xpose.msra.mxu0 0.0
    %183 = vmatprep.subr.mxu0 0.0
    %184 = vmatpush1.xpose.msra.mxu0 0.0
    %185 = vmatprep.subr.mxu0 0.0
    %186 = vmatpush1.xpose.msra.mxu0 0.0
    %187 = vmatprep.subr.mxu0 0.0
    %188 = vmatpush1.xpose.msra.mxu0 0.0
    %189 = vmatprep.subr.mxu0 0.0
    %190 = vmatpush1.xpose.msra.mxu0 0.0
    %191 = vmatprep.subr.mxu0 0.0
    %192 = vmatpush1.xpose.msra.mxu0 0.0
    %193 = vmatprep.subr.mxu0 0.0
    %194 = vmatpush1.xpose.msra.mxu0 0.0
    %195 = vmatprep.subr.mxu0 0.0
    %196 = vmatpush1.xpose.msra.mxu0 0.0
    %197 = vmatprep.subr.mxu0 0.0
    %198 = vmatpush1.xpose.msra.mxu0 0.0
    %199 = vmatprep.subr.mxu0 0.0
    %200 = vmatpush1.xpose.msra.mxu0 0.0
    %201 = vmatprep.subr.mxu0 0.0
    %202 = vmatpush1.xpose.msra.mxu0 0.0
    %203 = vmatprep.subr.mxu0 0.0
    %204 = vmatpush1.xpose.msra.mxu0 0.0
    %205 = vmatprep.subr.mxu0 0.0
    %206 = vmatpush1.xpose.msra.mxu0 0.0
    %207 = vmatprep.subr.mxu0 0.0
    %208 = vmatpush1.xpose.msra.mxu0 0.0
    %209 = vmatprep.subr.mxu0 0.0
    %210 = vmatpush1.xpose.msra.mxu0 0.0
    %211 = vmatprep.subr.mxu0 0.0
    %212 = vmatpush1.xpose.msra.mxu0 0.0
    %213 = vmatprep.subr.mxu0 0.0
    %214 = vmatpush1.xpose.msra.mxu0 0.0
    %215 = vmatprep.subr.mxu0 0.0
    %216 = vmatpush1.xpose.msra.mxu0 0.0
    %217 = vmatprep.subr.mxu0 0.0
    %218 = vmatpush1.xpose.msra.mxu0 0.0
    %219 = vmatprep.subr.mxu0 0.0
    %220 = vmatpush1.xpose.msra.mxu0 0.0
    %221 = vmatprep.subr.mxu0 0.0
    %222 = vmatpush1.xpose.msra.mxu0 0.0
    %223 = vmatprep.subr.mxu0 0.0
    %224 = vmatpush1.xpose.msra.mxu0 0.0
    %225 = vmatprep.subr.mxu0 0.0
    %226 = vmatpush1.xpose.msra.mxu0 0.0
    %227 = vmatprep.subr.mxu0 0.0
    %228 = vmatpush1.xpose.msra.mxu0 0.0
    %229 = vmatprep.subr.mxu0 0.0
    %230 = vmatpush1.xpose.msra.mxu0 0.0
    %231 = vmatprep.subr.mxu0 0.0
    %232 = vmatpush1.xpose.msra.mxu0 0.0
    %233 = vmatprep.mubr.f32.mxu0 0.0
    %234 = vmatmul.mubr.f32.gmra.mrb[0].mxu0 %v165
    %v235 = vpop.f32.mrb[0].mxu0
    %v236 = vadd.f32 0.0, %v235
    %v237 = vpop.f32.mrb[0].mxu0
    %238 = vdwg.mxu0
    %v239 = vmul.f32 %v236, 0.35355338
    %v240 = vlaneseq
    %v241 = vshrl.u32 %v240, 7
    %v242 = vsub.s32 0, %v241
    %v243 = vrot.slane %v67, %v242
    %v244 = vadd.f32 %v239, %v243
    %v245 = vsel %vm164, %v244, -inf
    %246 = vmax.xlane.f32.xlu0 %v245
    %v247 = vpop.xlane.xlu0 %246
    %v248 = vsub.f32 %v244, %v247
    %v249 = vmul.f32 %v248, 1.442695
    %v250 = vpow.pop %v249
    %v251 = vsel %vm164, %v250, 0.0
    %252 = vadd.xlane.f32.xlu0 %v251
    %v253 = vpop.xlane.xlu0 %252
    %v254 = vrcp.pop %v253
    %v255 = vmul.f32 %v250, %v254
    %256 = vrot.lane.b32.xlu0 %v153, 64
    %v257 = vpop.permute.xlu0 %256
    %v260 = vsel %vm164, %v255, 0
    %262 = vmatprep.subr.mxu0 0.0
    %263 = vmatpush1.msra.mxu0 %v257
    %264 = vmatprep.subr.mxu0 0.0
    %265 = vmatpush1.msra.mxu0 0.0
    %266 = vmatprep.subr.mxu0 0.0
    %267 = vmatpush1.msra.mxu0 0.0
    %268 = vmatprep.subr.mxu0 0.0
    %269 = vmatpush1.msra.mxu0 0.0
    %270 = vmatprep.subr.mxu0 0.0
    %271 = vmatpush1.msra.mxu0 0.0
    %272 = vmatprep.subr.mxu0 0.0
    %273 = vmatpush1.msra.mxu0 0.0
    %274 = vmatprep.subr.mxu0 0.0
    %275 = vmatpush1.msra.mxu0 0.0
    %276 = vmatprep.subr.mxu0 0.0
    %277 = vmatpush1.msra.mxu0 0.0
    %278 = vmatprep.subr.mxu0 0.0
    %279 = vmatpush1.msra.mxu0 0.0
    %280 = vmatprep.subr.mxu0 0.0
    %281 = vmatpush1.msra.mxu0 0.0
    %282 = vmatprep.subr.mxu0 0.0
    %283 = vmatpush1.msra.mxu0 0.0
    %284 = vmatprep.subr.mxu0 0.0
    %285 = vmatpush1.msra.mxu0 0.0
    %286 = vmatprep.subr.mxu0 0.0
    %287 = vmatpush1.msra.mxu0 0.0
    %288 = vmatprep.subr.mxu0 0.0
    %289 = vmatpush1.msra.mxu0 0.0
    %290 = vmatprep.subr.mxu0 0.0
    %291 = vmatpush1.msra.mxu0 0.0
    %292 = vmatprep.subr.mxu0 0.0
    %293 = vmatpush1.msra.mxu0 0.0
    %294 = vmatprep.subr.mxu0 0.0
    %295 = vmatpush1.msra.mxu0 0.0
    %296 = vmatprep.subr.mxu0 0.0
    %297 = vmatpush1.msra.mxu0 0.0
    %298 = vmatprep.subr.mxu0 0.0
    %299 = vmatpush1.msra.mxu0 0.0
    %300 = vmatprep.subr.mxu0 0.0
    %301 = vmatpush1.msra.mxu0 0.0
    %302 = vmatprep.subr.mxu0 0.0
    %303 = vmatpush1.msra.mxu0 0.0
    %304 = vmatprep.subr.mxu0 0.0
    %305 = vmatpush1.msra.mxu0 0.0
    %306 = vmatprep.subr.mxu0 0.0
    %307 = vmatpush1.msra.mxu0 0.0
    %308 = vmatprep.subr.mxu0 0.0
    %309 = vmatpush1.msra.mxu0 0.0
    %310 = vmatprep.subr.mxu0 0.0
    %311 = vmatpush1.msra.mxu0 0.0
    %312 = vmatprep.subr.mxu0 0.0
    %313 = vmatpush1.msra.mxu0 0.0
    %314 = vmatprep.subr.mxu0 0.0
    %315 = vmatpush1.msra.mxu0 0.0
    %316 = vmatprep.subr.mxu0 0.0
    %317 = vmatpush1.msra.mxu0 0.0
    %318 = vmatprep.subr.mxu0 0.0
    %319 = vmatpush1.msra.mxu0 0.0
    %320 = vmatprep.subr.mxu0 0.0
    %321 = vmatpush1.msra.mxu0 0.0
    %322 = vmatprep.subr.mxu0 0.0
    %323 = vmatpush1.msra.mxu0 0.0
    %324 = vmatprep.subr.mxu0 0.0
    %325 = vmatpush1.msra.mxu0 0.0
    %326 = vmatprep.mubr.f32.mxu0 0.0
    %327 = vmatmul.mubr.f32.gmra.mrb[0].mxu0 %v260
    %v328 = vpop.f32.mrb[0].mxu0
    %v329 = vadd.f32 0.0, %v328
    %v330 = vpop.f32.mrb[0].mxu0
    %331 = vdwg.mxu0
    %332 = vrot.lane.b32.xlu0 %v153, 120
    %v333 = vpop.permute.xlu0 %332
    %334 = vrot.lane.b32.xlu0 %v153, 88
    %v335 = vpop.permute.xlu0 %334
    %v336 = vsel %vm164, %v333, 0
    %v338 = vsel %vm164, %v335, 0
    %340 = vmatprep.subr.mxu0 0.0
    %341 = vmatpush1.xpose.msra.mxu0 %v338
    %342 = vmatprep.subr.mxu0 0.0
    %343 = vmatpush1.xpose.msra.mxu0 0.0
    %344 = vmatprep.subr.mxu0 0.0
    %345 = vmatpush1.xpose.msra.mxu0 0.0
    %346 = vmatprep.subr.mxu0 0.0
    %347 = vmatpush1.xpose.msra.mxu0 0.0
    %348 = vmatprep.subr.mxu0 0.0
    %349 = vmatpush1.xpose.msra.mxu0 0.0
    %350 = vmatprep.subr.mxu0 0.0
    %351 = vmatpush1.xpose.msra.mxu0 0.0
    %352 = vmatprep.subr.mxu0 0.0
    %353 = vmatpush1.xpose.msra.mxu0 0.0
    %354 = vmatprep.subr.mxu0 0.0
    %355 = vmatpush1.xpose.msra.mxu0 0.0
    %356 = vmatprep.subr.mxu0 0.0
    %357 = vmatpush1.xpose.msra.mxu0 0.0
    %358 = vmatprep.subr.mxu0 0.0
    %359 = vmatpush1.xpose.msra.mxu0 0.0
    %360 = vmatprep.subr.mxu0 0.0
    %361 = vmatpush1.xpose.msra.mxu0 0.0
    %362 = vmatprep.subr.mxu0 0.0
    %363 = vmatpush1.xpose.msra.mxu0 0.0
    %364 = vmatprep.subr.mxu0 0.0
    %365 = vmatpush1.xpose.msra.mxu0 0.0
    %366 = vmatprep.subr.mxu0 0.0
    %367 = vmatpush1.xpose.msra.mxu0 0.0
    %368 = vmatprep.subr.mxu0 0.0
    %369 = vmatpush1.xpose.msra.mxu0 0.0
    %370 = vmatprep.subr.mxu0 0.0
    %371 = vmatpush1.xpose.msra.mxu0 0.0
    %372 = vmatprep.subr.mxu0 0.0
    %373 = vmatpush1.xpose.msra.mxu0 0.0
    %374 = vmatprep.subr.mxu0 0.0
    %375 = vmatpush1.xpose.msra.mxu0 0.0
    %376 = vmatprep.subr.mxu0 0.0
    %377 = vmatpush1.xpose.msra.mxu0 0.0
    %378 = vmatprep.subr.mxu0 0.0
    %379 = vmatpush1.xpose.msra.mxu0 0.0
    %380 = vmatprep.subr.mxu0 0.0
    %381 = vmatpush1.xpose.msra.mxu0 0.0
    %382 = vmatprep.subr.mxu0 0.0
    %383 = vmatpush1.xpose.msra.mxu0 0.0
    %384 = vmatprep.subr.mxu0 0.0
    %385 = vmatpush1.xpose.msra.mxu0 0.0
    %386 = vmatprep.subr.mxu0 0.0
    %387 = vmatpush1.xpose.msra.mxu0 0.0
    %388 = vmatprep.subr.mxu0 0.0
    %389 = vmatpush1.xpose.msra.mxu0 0.0
    %390 = vmatprep.subr.mxu0 0.0
    %391 = vmatpush1.xpose.msra.mxu0 0.0
    %392 = vmatprep.subr.mxu0 0.0
    %393 = vmatpush1.xpose.msra.mxu0 0.0
    %394 = vmatprep.subr.mxu0 0.0
    %395 = vmatpush1.xpose.msra.mxu0 0.0
    %396 = vmatprep.subr.mxu0 0.0
    %397 = vmatpush1.xpose.msra.mxu0 0.0
    %398 = vmatprep.subr.mxu0 0.0
    %399 = vmatpush1.xpose.msra.mxu0 0.0
    %400 = vmatprep.subr.mxu0 0.0
    %401 = vmatpush1.xpose.msra.mxu0 0.0
    %402 = vmatprep.subr.mxu0 0.0
    %403 = vmatpush1.xpose.msra.mxu0 0.0
    %404 = vmatprep.mubr.f32.mxu0 0.0
    %405 = vmatmul.mubr.f32.gmra.mrb[0].mxu0 %v336
    %v406 = vpop.f32.mrb[0].mxu0
    %v407 = vadd.f32 0.0, %v406
    %v408 = vpop.f32.mrb[0].mxu0
    %409 = vdwg.mxu0
    %v410 = vmul.f32 %v407, 0.35355338
    %v411 = vadd.f32 %v410, %v243
    %v412 = vsel %vm164, %v411, -inf
    %413 = vmax.xlane.f32.xlu0 %v412
    %v414 = vpop.xlane.xlu0 %413
    %v415 = vsub.f32 %v411, %v414
    %v416 = vmul.f32 %v415, 1.442695
    %v417 = vpow.pop %v416
    %v418 = vsel %vm164, %v417, 0.0
    %419 = vadd.xlane.f32.xlu0 %v418
    %v420 = vpop.xlane.xlu0 %419
    %v421 = vrcp.pop %v420
    %v422 = vmul.f32 %v417, %v421
    %423 = vrot.lane.b32.xlu0 %v153, 56
    %v424 = vpop.permute.xlu0 %423
    %v427 = vsel %vm164, %v422, 0
    %429 = vmatprep.subr.mxu0 0.0
    %430 = vmatpush1.msra.mxu0 %v424
    %431 = vmatprep.subr.mxu0 0.0
    %432 = vmatpush1.msra.mxu0 0.0
    %433 = vmatprep.subr.mxu0 0.0
    %434 = vmatpush1.msra.mxu0 0.0
    %435 = vmatprep.subr.mxu0 0.0
    %436 = vmatpush1.msra.mxu0 0.0
    %437 = vmatprep.subr.mxu0 0.0
    %438 = vmatpush1.msra.mxu0 0.0
    %439 = vmatprep.subr.mxu0 0.0
    %440 = vmatpush1.msra.mxu0 0.0
    %441 = vmatprep.subr.mxu0 0.0
    %442 = vmatpush1.msra.mxu0 0.0
    %443 = vmatprep.subr.mxu0 0.0
    %444 = vmatpush1.msra.mxu0 0.0
    %445 = vmatprep.subr.mxu0 0.0
    %446 = vmatpush1.msra.mxu0 0.0
    %447 = vmatprep.subr.mxu0 0.0
    %448 = vmatpush1.msra.mxu0 0.0
    %449 = vmatprep.subr.mxu0 0.0
    %450 = vmatpush1.msra.mxu0 0.0
    %451 = vmatprep.subr.mxu0 0.0
    %452 = vmatpush1.msra.mxu0 0.0
    %453 = vmatprep.subr.mxu0 0.0
    %454 = vmatpush1.msra.mxu0 0.0
    %455 = vmatprep.subr.mxu0 0.0
    %456 = vmatpush1.msra.mxu0 0.0
    %457 = vmatprep.subr.mxu0 0.0
    %458 = vmatpush1.msra.mxu0 0.0
    %459 = vmatprep.subr.mxu0 0.0
    %460 = vmatpush1.msra.mxu0 0.0
    %461 = vmatprep.subr.mxu0 0.0
    %462 = vmatpush1.msra.mxu0 0.0
    %463 = vmatprep.subr.mxu0 0.0
    %464 = vmatpush1.msra.mxu0 0.0
    %465 = vmatprep.subr.mxu0 0.0
    %466 = vmatpush1.msra.mxu0 0.0
    %467 = vmatprep.subr.mxu0 0.0
    %468 = vmatpush1.msra.mxu0 0.0
    %469 = vmatprep.subr.mxu0 0.0
    %470 = vmatpush1.msra.mxu0 0.0
    %471 = vmatprep.subr.mxu0 0.0
    %472 = vmatpush1.msra.mxu0 0.0
    %473 = vmatprep.subr.mxu0 0.0
    %474 = vmatpush1.msra.mxu0 0.0
    %475 = vmatprep.subr.mxu0 0.0
    %476 = vmatpush1.msra.mxu0 0.0
    %477 = vmatprep.subr.mxu0 0.0
    %478 = vmatpush1.msra.mxu0 0.0
    %479 = vmatprep.subr.mxu0 0.0
    %480 = vmatpush1.msra.mxu0 0.0
    %481 = vmatprep.subr.mxu0 0.0
    %482 = vmatpush1.msra.mxu0 0.0
    %483 = vmatprep.subr.mxu0 0.0
    %484 = vmatpush1.msra.mxu0 0.0
    %485 = vmatprep.subr.mxu0 0.0
    %486 = vmatpush1.msra.mxu0 0.0
    %487 = vmatprep.subr.mxu0 0.0
    %488 = vmatpush1.msra.mxu0 0.0
    %489 = vmatprep.subr.mxu0 0.0
    %490 = vmatpush1.msra.mxu0 0.0
    %491 = vmatprep.subr.mxu0 0.0
    %492 = vmatpush1.msra.mxu0 0.0
    %493 = vmatprep.mubr.f32.mxu0 0.0
    %494 = vmatmul.mubr.f32.gmra.mrb[0].mxu0 %v427
    %v495 = vpop.f32.mrb[0].mxu0
    %v496 = vadd.f32 0.0, %v495
    %v497 = vpop.f32.mrb[0].mxu0
    %498 = vdwg.mxu0
    %499 = vrot.lane.b32.xlu0 %v153, 112
    %v500 = vpop.permute.xlu0 %499
    %501 = vrot.lane.b32.xlu0 %v153, 80
    %v502 = vpop.permute.xlu0 %501
    %v503 = vsel %vm164, %v500, 0
    %v505 = vsel %vm164, %v502, 0
    %507 = vmatprep.subr.mxu0 0.0
    %508 = vmatpush1.xpose.msra.mxu0 %v505
    %509 = vmatprep.subr.mxu0 0.0
    %510 = vmatpush1.xpose.msra.mxu0 0.0
    %511 = vmatprep.subr.mxu0 0.0
    %512 = vmatpush1.xpose.msra.mxu0 0.0
    %513 = vmatprep.subr.mxu0 0.0
    %514 = vmatpush1.xpose.msra.mxu0 0.0
    %515 = vmatprep.subr.mxu0 0.0
    %516 = vmatpush1.xpose.msra.mxu0 0.0
    %517 = vmatprep.subr.mxu0 0.0
    %518 = vmatpush1.xpose.msra.mxu0 0.0
    %519 = vmatprep.subr.mxu0 0.0
    %520 = vmatpush1.xpose.msra.mxu0 0.0
    %521 = vmatprep.subr.mxu0 0.0
    %522 = vmatpush1.xpose.msra.mxu0 0.0
    %523 = vmatprep.subr.mxu0 0.0
    %524 = vmatpush1.xpose.msra.mxu0 0.0
    %525 = vmatprep.subr.mxu0 0.0
    %526 = vmatpush1.xpose.msra.mxu0 0.0
    %527 = vmatprep.subr.mxu0 0.0
    %528 = vmatpush1.xpose.msra.mxu0 0.0
    %529 = vmatprep.subr.mxu0 0.0
    %530 = vmatpush1.xpose.msra.mxu0 0.0
    %531 = vmatprep.subr.mxu0 0.0
    %532 = vmatpush1.xpose.msra.mxu0 0.0
    %533 = vmatprep.subr.mxu0 0.0
    %534 = vmatpush1.xpose.msra.mxu0 0.0
    %535 = vmatprep.subr.mxu0 0.0
    %536 = vmatpush1.xpose.msra.mxu0 0.0
    %537 = vmatprep.subr.mxu0 0.0
    %538 = vmatpush1.xpose.msra.mxu0 0.0
    %539 = vmatprep.subr.mxu0 0.0
    %540 = vmatpush1.xpose.msra.mxu0 0.0
    %541 = vmatprep.subr.mxu0 0.0
    %542 = vmatpush1.xpose.msra.mxu0 0.0
    %543 = vmatprep.subr.mxu0 0.0
    %544 = vmatpush1.xpose.msra.mxu0 0.0
    %545 = vmatprep.subr.mxu0 0.0
    %546 = vmatpush1.xpose.msra.mxu0 0.0
    %547 = vmatprep.subr.mxu0 0.0
    %548 = vmatpush1.xpose.msra.mxu0 0.0
    %549 = vmatprep.subr.mxu0 0.0
    %550 = vmatpush1.xpose.msra.mxu0 0.0
    %551 = vmatprep.subr.mxu0 0.0
    %552 = vmatpush1.xpose.msra.mxu0 0.0
    %553 = vmatprep.subr.mxu0 0.0
    %554 = vmatpush1.xpose.msra.mxu0 0.0
    %555 = vmatprep.subr.mxu0 0.0
    %556 = vmatpush1.xpose.msra.mxu0 0.0
    %557 = vmatprep.subr.mxu0 0.0
    %558 = vmatpush1.xpose.msra.mxu0 0.0
    %559 = vmatprep.subr.mxu0 0.0
    %560 = vmatpush1.xpose.msra.mxu0 0.0
    %561 = vmatprep.subr.mxu0 0.0
    %562 = vmatpush1.xpose.msra.mxu0 0.0
    %563 = vmatprep.subr.mxu0 0.0
    %564 = vmatpush1.xpose.msra.mxu0 0.0
    %565 = vmatprep.subr.mxu0 0.0
    %566 = vmatpush1.xpose.msra.mxu0 0.0
    %567 = vmatprep.subr.mxu0 0.0
    %568 = vmatpush1.xpose.msra.mxu0 0.0
    %569 = vmatprep.subr.mxu0 0.0
    %570 = vmatpush1.xpose.msra.mxu0 0.0
    %571 = vmatprep.mubr.f32.mxu0 0.0
    %572 = vmatmul.mubr.f32.gmra.mrb[0].mxu0 %v503
    %v573 = vpop.f32.mrb[0].mxu0
    %v574 = vadd.f32 0.0, %v573
    %v575 = vpop.f32.mrb[0].mxu0
    %576 = vdwg.mxu0
    %v577 = vmul.f32 %v574, 0.35355338
    %v578 = vadd.f32 %v577, %v243
    %v579 = vsel %vm164, %v578, -inf
    %580 = vmax.xlane.f32.xlu0 %v579
    %v581 = vpop.xlane.xlu0 %580
    %v582 = vsub.f32 %v578, %v581
    %v583 = vmul.f32 %v582, 1.442695
    %v584 = vpow.pop %v583
    %v585 = vsel %vm164, %v584, 0.0
    %586 = vadd.xlane.f32.xlu0 %v585
    %v587 = vpop.xlane.xlu0 %586
    %v588 = vrcp.pop %v587
    %v589 = vmul.f32 %v584, %v588
    %590 = vrot.lane.b32.xlu0 %v153, 48
    %v591 = vpop.permute.xlu0 %590
    %v594 = vsel %vm164, %v589, 0
    %596 = vmatprep.subr.mxu0 0.0
    %597 = vmatpush1.msra.mxu0 %v591
    %598 = vmatprep.subr.mxu0 0.0
    %599 = vmatpush1.msra.mxu0 0.0
    %600 = vmatprep.subr.mxu0 0.0
    %601 = vmatpush1.msra.mxu0 0.0
    %602 = vmatprep.subr.mxu0 0.0
    %603 = vmatpush1.msra.mxu0 0.0
    %604 = vmatprep.subr.mxu0 0.0
    %605 = vmatpush1.msra.mxu0 0.0
    %606 = vmatprep.subr.mxu0 0.0
    %607 = vmatpush1.msra.mxu0 0.0
    %608 = vmatprep.subr.mxu0 0.0
    %609 = vmatpush1.msra.mxu0 0.0
    %610 = vmatprep.subr.mxu0 0.0
    %611 = vmatpush1.msra.mxu0 0.0
    %612 = vmatprep.subr.mxu0 0.0
    %613 = vmatpush1.msra.mxu0 0.0
    %614 = vmatprep.subr.mxu0 0.0
    %615 = vmatpush1.msra.mxu0 0.0
    %616 = vmatprep.subr.mxu0 0.0
    %617 = vmatpush1.msra.mxu0 0.0
    %618 = vmatprep.subr.mxu0 0.0
    %619 = vmatpush1.msra.mxu0 0.0
    %620 = vmatprep.subr.mxu0 0.0
    %621 = vmatpush1.msra.mxu0 0.0
    %622 = vmatprep.subr.mxu0 0.0
    %623 = vmatpush1.msra.mxu0 0.0
    %624 = vmatprep.subr.mxu0 0.0
    %625 = vmatpush1.msra.mxu0 0.0
    %626 = vmatprep.subr.mxu0 0.0
    %627 = vmatpush1.msra.mxu0 0.0
    %628 = vmatprep.subr.mxu0 0.0
    %629 = vmatpush1.msra.mxu0 0.0
    %630 = vmatprep.subr.mxu0 0.0
    %631 = vmatpush1.msra.mxu0 0.0
    %632 = vmatprep.subr.mxu0 0.0
    %633 = vmatpush1.msra.mxu0 0.0
    %634 = vmatprep.subr.mxu0 0.0
    %635 = vmatpush1.msra.mxu0 0.0
    %636 = vmatprep.subr.mxu0 0.0
    %637 = vmatpush1.msra.mxu0 0.0
    %638 = vmatprep.subr.mxu0 0.0
    %639 = vmatpush1.msra.mxu0 0.0
    %640 = vmatprep.subr.mxu0 0.0
    %641 = vmatpush1.msra.mxu0 0.0
    %642 = vmatprep.subr.mxu0 0.0
    %643 = vmatpush1.msra.mxu0 0.0
    %644 = vmatprep.subr.mxu0 0.0
    %645 = vmatpush1.msra.mxu0 0.0
    %646 = vmatprep.subr.mxu0 0.0
    %647 = vmatpush1.msra.mxu0 0.0
    %648 = vmatprep.subr.mxu0 0.0
    %649 = vmatpush1.msra.mxu0 0.0
    %650 = vmatprep.subr.mxu0 0.0
    %651 = vmatpush1.msra.mxu0 0.0
    %652 = vmatprep.subr.mxu0 0.0
    %653 = vmatpush1.msra.mxu0 0.0
    %654 = vmatprep.subr.mxu0 0.0
    %655 = vmatpush1.msra.mxu0 0.0
    %656 = vmatprep.subr.mxu0 0.0
    %657 = vmatpush1.msra.mxu0 0.0
    %658 = vmatprep.subr.mxu0 0.0
    %659 = vmatpush1.msra.mxu0 0.0
    %660 = vmatprep.mubr.f32.mxu0 0.0
    %661 = vmatmul.mubr.f32.gmra.mrb[0].mxu0 %v594
    %v662 = vpop.f32.mrb[0].mxu0
    %v663 = vadd.f32 0.0, %v662
    %v664 = vpop.f32.mrb[0].mxu0
    %665 = vdwg.mxu0
    %666 = vrot.lane.b32.xlu0 %v153, 104
    %v667 = vpop.permute.xlu0 %666
    %668 = vrot.lane.b32.xlu0 %v153, 72
    %v669 = vpop.permute.xlu0 %668
    %v670 = vsel %vm164, %v667, 0
    %v672 = vsel %vm164, %v669, 0
    %674 = vmatprep.subr.mxu0 0.0
    %675 = vmatpush1.xpose.msra.mxu0 %v672
    %676 = vmatprep.subr.mxu0 0.0
    %677 = vmatpush1.xpose.msra.mxu0 0.0
    %678 = vmatprep.subr.mxu0 0.0
    %679 = vmatpush1.xpose.msra.mxu0 0.0
    %680 = vmatprep.subr.mxu0 0.0
    %681 = vmatpush1.xpose.msra.mxu0 0.0
    %682 = vmatprep.subr.mxu0 0.0
    %683 = vmatpush1.xpose.msra.mxu0 0.0
    %684 = vmatprep.subr.mxu0 0.0
    %685 = vmatpush1.xpose.msra.mxu0 0.0
    %686 = vmatprep.subr.mxu0 0.0
    %687 = vmatpush1.xpose.msra.mxu0 0.0
    %688 = vmatprep.subr.mxu0 0.0
    %689 = vmatpush1.xpose.msra.mxu0 0.0
    %690 = vmatprep.subr.mxu0 0.0
    %691 = vmatpush1.xpose.msra.mxu0 0.0
    %692 = vmatprep.subr.mxu0 0.0
    %693 = vmatpush1.xpose.msra.mxu0 0.0
    %694 = vmatprep.subr.mxu0 0.0
    %695 = vmatpush1.xpose.msra.mxu0 0.0
    %696 = vmatprep.subr.mxu0 0.0
    %697 = vmatpush1.xpose.msra.mxu0 0.0
    %698 = vmatprep.subr.mxu0 0.0
    %699 = vmatpush1.xpose.msra.mxu0 0.0
    %700 = vmatprep.subr.mxu0 0.0
    %701 = vmatpush1.xpose.msra.mxu0 0.0
    %702 = vmatprep.subr.mxu0 0.0
    %703 = vmatpush1.xpose.msra.mxu0 0.0
    %704 = vmatprep.subr.mxu0 0.0
    %705 = vmatpush1.xpose.msra.mxu0 0.0
    %706 = vmatprep.subr.mxu0 0.0
    %707 = vmatpush1.xpose.msra.mxu0 0.0
    %708 = vmatprep.subr.mxu0 0.0
    %709 = vmatpush1.xpose.msra.mxu0 0.0
    %710 = vmatprep.subr.mxu0 0.0
    %711 = vmatpush1.xpose.msra.mxu0 0.0
    %712 = vmatprep.subr.mxu0 0.0
    %713 = vmatpush1.xpose.msra.mxu0 0.0
    %714 = vmatprep.subr.mxu0 0.0
    %715 = vmatpush1.xpose.msra.mxu0 0.0
    %716 = vmatprep.subr.mxu0 0.0
    %717 = vmatpush1.xpose.msra.mxu0 0.0
    %718 = vmatprep.subr.mxu0 0.0
    %719 = vmatpush1.xpose.msra.mxu0 0.0
    %720 = vmatprep.subr.mxu0 0.0
    %721 = vmatpush1.xpose.msra.mxu0 0.0
    %722 = vmatprep.subr.mxu0 0.0
    %723 = vmatpush1.xpose.msra.mxu0 0.0
    %724 = vmatprep.subr.mxu0 0.0
    %725 = vmatpush1.xpose.msra.mxu0 0.0
    %726 = vmatprep.subr.mxu0 0.0
    %727 = vmatpush1.xpose.msra.mxu0 0.0
    %728 = vmatprep.subr.mxu0 0.0
    %729 = vmatpush1.xpose.msra.mxu0 0.0
    %730 = vmatprep.subr.mxu0 0.0
    %731 = vmatpush1.xpose.msra.mxu0 0.0
    %732 = vmatprep.subr.mxu0 0.0
    %733 = vmatpush1.xpose.msra.mxu0 0.0
    %734 = vmatprep.subr.mxu0 0.0
    %735 = vmatpush1.xpose.msra.mxu0 0.0
    %736 = vmatprep.subr.mxu0 0.0
    %737 = vmatpush1.xpose.msra.mxu0 0.0
    %738 = vmatprep.mubr.f32.mxu0 0.0
    %739 = vmatmul.mubr.f32.gmra.mrb[0].mxu0 %v670
    %v740 = vpop.f32.mrb[0].mxu0
    %v741 = vadd.f32 0.0, %v740
    %v742 = vpop.f32.mrb[0].mxu0
    %743 = vdwg.mxu0
    %v744 = vmul.f32 %v741, 0.35355338
    %v745 = vadd.f32 %v744, %v243
    %v746 = vsel %vm164, %v745, -inf
    %747 = vmax.xlane.f32.xlu0 %v746
    %v748 = vpop.xlane.xlu0 %747
    %v749 = vsub.f32 %v745, %v748
    %v750 = vmul.f32 %v749, 1.442695
    %v751 = vpow.pop %v750
    %v752 = vsel %vm164, %v751, 0.0
    %753 = vadd.xlane.f32.xlu0 %v752
    %v754 = vpop.xlane.xlu0 %753
    %v755 = vrcp.pop %v754
    %v756 = vmul.f32 %v751, %v755
    %757 = vrot.lane.b32.xlu0 %v153, 40
    %v758 = vpop.permute.xlu0 %757
    %v761 = vsel %vm164, %v756, 0
    %763 = vmatprep.subr.mxu0 0.0
    %764 = vmatpush1.msra.mxu0 %v758
    %765 = vmatprep.subr.mxu0 0.0
    %766 = vmatpush1.msra.mxu0 0.0
    %767 = vmatprep.subr.mxu0 0.0
    %768 = vmatpush1.msra.mxu0 0.0
    %769 = vmatprep.subr.mxu0 0.0
    %770 = vmatpush1.msra.mxu0 0.0
    %771 = vmatprep.subr.mxu0 0.0
    %772 = vmatpush1.msra.mxu0 0.0
    %773 = vmatprep.subr.mxu0 0.0
    %774 = vmatpush1.msra.mxu0 0.0
    %775 = vmatprep.subr.mxu0 0.0
    %776 = vmatpush1.msra.mxu0 0.0
    %777 = vmatprep.subr.mxu0 0.0
    %778 = vmatpush1.msra.mxu0 0.0
    %779 = vmatprep.subr.mxu0 0.0
    %780 = vmatpush1.msra.mxu0 0.0
    %781 = vmatprep.subr.mxu0 0.0
    %782 = vmatpush1.msra.mxu0 0.0
    %783 = vmatprep.subr.mxu0 0.0
    %784 = vmatpush1.msra.mxu0 0.0
    %785 = vmatprep.subr.mxu0 0.0
    %786 = vmatpush1.msra.mxu0 0.0
    %787 = vmatprep.subr.mxu0 0.0
    %788 = vmatpush1.msra.mxu0 0.0
    %789 = vmatprep.subr.mxu0 0.0
    %790 = vmatpush1.msra.mxu0 0.0
    %791 = vmatprep.subr.mxu0 0.0
    %792 = vmatpush1.msra.mxu0 0.0
    %793 = vmatprep.subr.mxu0 0.0
    %794 = vmatpush1.msra.mxu0 0.0
    %795 = vmatprep.subr.mxu0 0.0
    %796 = vmatpush1.msra.mxu0 0.0
    %797 = vmatprep.subr.mxu0 0.0
    %798 = vmatpush1.msra.mxu0 0.0
    %799 = vmatprep.subr.mxu0 0.0
    %800 = vmatpush1.msra.mxu0 0.0
    %801 = vmatprep.subr.mxu0 0.0
    %802 = vmatpush1.msra.mxu0 0.0
    %803 = vmatprep.subr.mxu0 0.0
    %804 = vmatpush1.msra.mxu0 0.0
    %805 = vmatprep.subr.mxu0 0.0
    %806 = vmatpush1.msra.mxu0 0.0
    %807 = vmatprep.subr.mxu0 0.0
    %808 = vmatpush1.msra.mxu0 0.0
    %809 = vmatprep.subr.mxu0 0.0
    %810 = vmatpush1.msra.mxu0 0.0
    %811 = vmatprep.subr.mxu0 0.0
    %812 = vmatpush1.msra.mxu0 0.0
    %813 = vmatprep.subr.mxu0 0.0
    %814 = vmatpush1.msra.mxu0 0.0
    %815 = vmatprep.subr.mxu0 0.0
    %816 = vmatpush1.msra.mxu0 0.0
    %817 = vmatprep.subr.mxu0 0.0
    %818 = vmatpush1.msra.mxu0 0.0
    %819 = vmatprep.subr.mxu0 0.0
    %820 = vmatpush1.msra.mxu0 0.0
    %821 = vmatprep.subr.mxu0 0.0
    %822 = vmatpush1.msra.mxu0 0.0
    %823 = vmatprep.subr.mxu0 0.0
    %824 = vmatpush1.msra.mxu0 0.0
    %825 = vmatprep.subr.mxu0 0.0
    %826 = vmatpush1.msra.mxu0 0.0
    %827 = vmatprep.mubr.f32.mxu0 0.0
    %828 = vmatmul.mubr.f32.gmra.mrb[0].mxu0 %v761
    %v829 = vpop.f32.mrb[0].mxu0
    %v830 = vadd.f32 0.0, %v829
    %v831 = vpop.f32.mrb[0].mxu0
    %832 = vdwg.mxu0
    %834 = vrot.lane.b32.xlu0 %v496, 8
    %v835 = vpop.permute.xlu0 %834
    %838 = vrot.lane.b32.xlu0 %v663, 16
    %v839 = vpop.permute.xlu0 %838
    %842 = vrot.lane.b32.xlu0 %v830, 24
    %v843 = vpop.permute.xlu0 %842
    %v845 = vsel %vm164, %v329, %v835
    %vm846 = vcmask 130048
    %v847 = vsel %vm846, %v845, %v839
    %vm848 = vcmask 195584
    %v849 = vsel %vm848, %v847, %v843
    %851 = vrot.lane.b32.xlu0 %v158, 96
    %v852 = vpop.permute.xlu0 %851
    %v853 = vsel %vm164, %v158, 0
    %v855 = vsel %vm164, %v852, 0
    %857 = vmatprep.subr.mxu0 0.0
    %858 = vmatpush1.xpose.msra.mxu0 %v855
    %859 = vmatprep.subr.mxu0 0.0
    %860 = vmatpush1.xpose.msra.mxu0 0.0
    %861 = vmatprep.subr.mxu0 0.0
    %862 = vmatpush1.xpose.msra.mxu0 0.0
    %863 = vmatprep.subr.mxu0 0.0
    %864 = vmatpush1.xpose.msra.mxu0 0.0
    %865 = vmatprep.subr.mxu0 0.0
    %866 = vmatpush1.xpose.msra.mxu0 0.0
    %867 = vmatprep.subr.mxu0 0.0
    %868 = vmatpush1.xpose.msra.mxu0 0.0
    %869 = vmatprep.subr.mxu0 0.0
    %870 = vmatpush1.xpose.msra.mxu0 0.0
    %871 = vmatprep.subr.mxu0 0.0
    %872 = vmatpush1.xpose.msra.mxu0 0.0
    %873 = vmatprep.subr.mxu0 0.0
    %874 = vmatpush1.xpose.msra.mxu0 0.0
    %875 = vmatprep.subr.mxu0 0.0
    %876 = vmatpush1.xpose.msra.mxu0 0.0
    %877 = vmatprep.subr.mxu0 0.0
    %878 = vmatpush1.xpose.msra.mxu0 0.0
    %879 = vmatprep.subr.mxu0 0.0
    %880 = vmatpush1.xpose.msra.mxu0 0.0
    %881 = vmatprep.subr.mxu0 0.0
    %882 = vmatpush1.xpose.msra.mxu0 0.0
    %883 = vmatprep.subr.mxu0 0.0
    %884 = vmatpush1.xpose.msra.mxu0 0.0
    %885 = vmatprep.subr.mxu0 0.0
    %886 = vmatpush1.xpose.msra.mxu0 0.0
    %887 = vmatprep.subr.mxu0 0.0
    %888 = vmatpush1.xpose.msra.mxu0 0.0
    %889 = vmatprep.subr.mxu0 0.0
    %890 = vmatpush1.xpose.msra.mxu0 0.0
    %891 = vmatprep.subr.mxu0 0.0
    %892 = vmatpush1.xpose.msra.mxu0 0.0
    %893 = vmatprep.subr.mxu0 0.0
    %894 = vmatpush1.xpose.msra.mxu0 0.0
    %895 = vmatprep.subr.mxu0 0.0
    %896 = vmatpush1.xpose.msra.mxu0 0.0
    %897 = vmatprep.subr.mxu0 0.0
    %898 = vmatpush1.xpose.msra.mxu0 0.0
    %899 = vmatprep.subr.mxu0 0.0
    %900 = vmatpush1.xpose.msra.mxu0 0.0
    %901 = vmatprep.subr.mxu0 0.0
    %902 = vmatpush1.xpose.msra.mxu0 0.0
    %903 = vmatprep.subr.mxu0 0.0
    %904 = vmatpush1.xpose.msra.mxu0 0.0
    %905 = vmatprep.subr.mxu0 0.0
    %906 = vmatpush1.xpose.msra.mxu0 0.0
    %907 = vmatprep.subr.mxu0 0.0
    %908 = vmatpush1.xpose.msra.mxu0 0.0
    %909 = vmatprep.subr.mxu0 0.0
    %910 = vmatpush1.xpose.msra.mxu0 0.0
    %911 = vmatprep.subr.mxu0 0.0
    %912 = vmatpush1.xpose.msra.mxu0 0.0
    %913 = vmatprep.subr.mxu0 0.0
    %914 = vmatpush1.xpose.msra.mxu0 0.0
    %915 = vmatprep.subr.mxu0 0.0
    %916 = vmatpush1.xpose.msra.mxu0 0.0
    %917 = vmatprep.subr.mxu0 0.0
    %918 = vmatpush1.xpose.msra.mxu0 0.0
    %919 = vmatprep.subr.mxu0 0.0
    %920 = vmatpush1.xpose.msra.mxu0 0.0
    %921 = vmatprep.mubr.f32.mxu0 0.0
    %922 = vmatmul.mubr.f32.gmra.mrb[0].mxu0 %v853
    %v923 = vpop.f32.mrb[0].mxu0
    %v924 = vadd.f32 0.0, %v923
    %v925 = vpop.f32.mrb[0].mxu0
    %926 = vdwg.mxu0
    %v927 = vmul.f32 %v924, 0.35355338
    %v928 = vlaneseq
    %v929 = vshrl.u32 %v928, 7
    %v930 = vsub.s32 1, %v929
    %v931 = vrot.slane %v67, %v930
    %v932 = vadd.f32 %v927, %v931
    %v933 = vsel %vm164, %v932, -inf
    %934 = vmax.xlane.f32.xlu0 %v933
    %v935 = vpop.xlane.xlu0 %934
    %v936 = vsub.f32 %v932, %v935
    %v937 = vmul.f32 %v936, 1.442695
    %v938 = vpow.pop %v937
    %v939 = vsel %vm164, %v938, 0.0
    %940 = vadd.xlane.f32.xlu0 %v939
    %v941 = vpop.xlane.xlu0 %940
    %v942 = vrcp.pop %v941
    %v943 = vmul.f32 %v938, %v942
    %944 = vrot.lane.b32.xlu0 %v158, 64
    %v945 = vpop.permute.xlu0 %944
    %v948 = vsel %vm164, %v943, 0
    %950 = vmatprep.subr.mxu0 0.0
    %951 = vmatpush1.msra.mxu0 %v945
    %952 = vmatprep.subr.mxu0 0.0
    %953 = vmatpush1.msra.mxu0 0.0
    %954 = vmatprep.subr.mxu0 0.0
    %955 = vmatpush1.msra.mxu0 0.0
    %956 = vmatprep.subr.mxu0 0.0
    %957 = vmatpush1.msra.mxu0 0.0
    %958 = vmatprep.subr.mxu0 0.0
    %959 = vmatpush1.msra.mxu0 0.0
    %960 = vmatprep.subr.mxu0 0.0
    %961 = vmatpush1.msra.mxu0 0.0
    %962 = vmatprep.subr.mxu0 0.0
    %963 = vmatpush1.msra.mxu0 0.0
    %964 = vmatprep.subr.mxu0 0.0
    %965 = vmatpush1.msra.mxu0 0.0
    %966 = vmatprep.subr.mxu0 0.0
    %967 = vmatpush1.msra.mxu0 0.0
    %968 = vmatprep.subr.mxu0 0.0
    %969 = vmatpush1.msra.mxu0 0.0
    %970 = vmatprep.subr.mxu0 0.0
    %971 = vmatpush1.msra.mxu0 0.0
    %972 = vmatprep.subr.mxu0 0.0
    %973 = vmatpush1.msra.mxu0 0.0
    %974 = vmatprep.subr.mxu0 0.0
    %975 = vmatpush1.msra.mxu0 0.0
    %976 = vmatprep.subr.mxu0 0.0
    %977 = vmatpush1.msra.mxu0 0.0
    %978 = vmatprep.subr.mxu0 0.0
    %979 = vmatpush1.msra.mxu0 0.0
    %980 = vmatprep.subr.mxu0 0.0
    %981 = vmatpush1.msra.mxu0 0.0
    %982 = vmatprep.subr.mxu0 0.0
    %983 = vmatpush1.msra.mxu0 0.0
    %984 = vmatprep.subr.mxu0 0.0
    %985 = vmatpush1.msra.mxu0 0.0
    %986 = vmatprep.subr.mxu0 0.0
    %987 = vmatpush1.msra.mxu0 0.0
    %988 = vmatprep.subr.mxu0 0.0
    %989 = vmatpush1.msra.mxu0 0.0
    %990 = vmatprep.subr.mxu0 0.0
    %991 = vmatpush1.msra.mxu0 0.0
    %992 = vmatprep.subr.mxu0 0.0
    %993 = vmatpush1.msra.mxu0 0.0
    %994 = vmatprep.subr.mxu0 0.0
    %995 = vmatpush1.msra.mxu0 0.0
    %996 = vmatprep.subr.mxu0 0.0
    %997 = vmatpush1.msra.mxu0 0.0
    %998 = vmatprep.subr.mxu0 0.0
    %999 = vmatpush1.msra.mxu0 0.0
    %1000 = vmatprep.subr.mxu0 0.0
    %1001 = vmatpush1.msra.mxu0 0.0
    %1002 = vmatprep.subr.mxu0 0.0
    %1003 = vmatpush1.msra.mxu0 0.0
    %1004 = vmatprep.subr.mxu0 0.0
    %1005 = vmatpush1.msra.mxu0 0.0
    %1006 = vmatprep.subr.mxu0 0.0
    %1007 = vmatpush1.msra.mxu0 0.0
    %1008 = vmatprep.subr.mxu0 0.0
    %1009 = vmatpush1.msra.mxu0 0.0
    %1010 = vmatprep.subr.mxu0 0.0
    %1011 = vmatpush1.msra.mxu0 0.0
    %1012 = vmatprep.subr.mxu0 0.0
    %1013 = vmatpush1.msra.mxu0 0.0
    %1014 = vmatprep.mubr.f32.mxu0 0.0
    %1015 = vmatmul.mubr.f32.gmra.mrb[0].mxu0 %v948
    %v1016 = vpop.f32.mrb[0].mxu0
    %v1017 = vadd.f32 0.0, %v1016
    %v1018 = vpop.f32.mrb[0].mxu0
    %1019 = vdwg.mxu0
    %1020 = vrot.lane.b32.xlu0 %v158, 120
    %v1021 = vpop.permute.xlu0 %1020
    %1022 = vrot.lane.b32.xlu0 %v158, 88
    %v1023 = vpop.permute.xlu0 %1022
    %v1024 = vsel %vm164, %v1021, 0
    %v1026 = vsel %vm164, %v1023, 0
    %1028 = vmatprep.subr.mxu0 0.0
    %1029 = vmatpush1.xpose.msra.mxu0 %v1026
    %1030 = vmatprep.subr.mxu0 0.0
    %1031 = vmatpush1.xpose.msra.mxu0 0.0
    %1032 = vmatprep.subr.mxu0 0.0
    %1033 = vmatpush1.xpose.msra.mxu0 0.0
    %1034 = vmatprep.subr.mxu0 0.0
    %1035 = vmatpush1.xpose.msra.mxu0 0.0
    %1036 = vmatprep.subr.mxu0 0.0
    %1037 = vmatpush1.xpose.msra.mxu0 0.0
    %1038 = vmatprep.subr.mxu0 0.0
    %1039 = vmatpush1.xpose.msra.mxu0 0.0
    %1040 = vmatprep.subr.mxu0 0.0
    %1041 = vmatpush1.xpose.msra.mxu0 0.0
    %1042 = vmatprep.subr.mxu0 0.0
    %1043 = vmatpush1.xpose.msra.mxu0 0.0
    %1044 = vmatprep.subr.mxu0 0.0
    %1045 = vmatpush1.xpose.msra.mxu0 0.0
    %1046 = vmatprep.subr.mxu0 0.0
    %1047 = vmatpush1.xpose.msra.mxu0 0.0
    %1048 = vmatprep.subr.mxu0 0.0
    %1049 = vmatpush1.xpose.msra.mxu0 0.0
    %1050 = vmatprep.subr.mxu0 0.0
    %1051 = vmatpush1.xpose.msra.mxu0 0.0
    %1052 = vmatprep.subr.mxu0 0.0
    %1053 = vmatpush1.xpose.msra.mxu0 0.0
    %1054 = vmatprep.subr.mxu0 0.0
    %1055 = vmatpush1.xpose.msra.mxu0 0.0
    %1056 = vmatprep.subr.mxu0 0.0
    %1057 = vmatpush1.xpose.msra.mxu0 0.0
    %1058 = vmatprep.subr.mxu0 0.0
    %1059 = vmatpush1.xpose.msra.mxu0 0.0
    %1060 = vmatprep.subr.mxu0 0.0
    %1061 = vmatpush1.xpose.msra.mxu0 0.0
    %1062 = vmatprep.subr.mxu0 0.0
    %1063 = vmatpush1.xpose.msra.mxu0 0.0
    %1064 = vmatprep.subr.mxu0 0.0
    %1065 = vmatpush1.xpose.msra.mxu0 0.0
    %1066 = vmatprep.subr.mxu0 0.0
    %1067 = vmatpush1.xpose.msra.mxu0 0.0
    %1068 = vmatprep.subr.mxu0 0.0
    %1069 = vmatpush1.xpose.msra.mxu0 0.0
    %1070 = vmatprep.subr.mxu0 0.0
    %1071 = vmatpush1.xpose.msra.mxu0 0.0
    %1072 = vmatprep.subr.mxu0 0.0
    %1073 = vmatpush1.xpose.msra.mxu0 0.0
    %1074 = vmatprep.subr.mxu0 0.0
    %1075 = vmatpush1.xpose.msra.mxu0 0.0
    %1076 = vmatprep.subr.mxu0 0.0
    %1077 = vmatpush1.xpose.msra.mxu0 0.0
    %1078 = vmatprep.subr.mxu0 0.0
    %1079 = vmatpush1.xpose.msra.mxu0 0.0
    %1080 = vmatprep.subr.mxu0 0.0
    %1081 = vmatpush1.xpose.msra.mxu0 0.0
    %1082 = vmatprep.subr.mxu0 0.0
    %1083 = vmatpush1.xpose.msra.mxu0 0.0
    %1084 = vmatprep.subr.mxu0 0.0
    %1085 = vmatpush1.xpose.msra.mxu0 0.0
    %1086 = vmatprep.subr.mxu0 0.0
    %1087 = vmatpush1.xpose.msra.mxu0 0.0
    %1088 = vmatprep.subr.mxu0 0.0
    %1089 = vmatpush1.xpose.msra.mxu0 0.0
    %1090 = vmatprep.subr.mxu0 0.0
    %1091 = vmatpush1.xpose.msra.mxu0 0.0
    %1092 = vmatprep.mubr.f32.mxu0 0.0
    %1093 = vmatmul.mubr.f32.gmra.mrb[0].mxu0 %v1024
    %v1094 = vpop.f32.mrb[0].mxu0
    %v1095 = vadd.f32 0.0, %v1094
    %v1096 = vpop.f32.mrb[0].mxu0
    %1097 = vdwg.mxu0
    %v1098 = vmul.f32 %v1095, 0.35355338
    %v1099 = vadd.f32 %v1098, %v931
    %v1100 = vsel %vm164, %v1099, -inf
    %1101 = vmax.xlane.f32.xlu0 %v1100
    %v1102 = vpop.xlane.xlu0 %1101
    %v1103 = vsub.f32 %v1099, %v1102
    %v1104 = vmul.f32 %v1103, 1.442695
    %v1105 = vpow.pop %v1104
    %v1106 = vsel %vm164, %v1105, 0.0
    %1107 = vadd.xlane.f32.xlu0 %v1106
    %v1108 = vpop.xlane.xlu0 %1107
    %v1109 = vrcp.pop %v1108
    %v1110 = vmul.f32 %v1105, %v1109
    %1111 = vrot.lane.b32.xlu0 %v158, 56
    %v1112 = vpop.permute.xlu0 %1111
    %v1115 = vsel %vm164, %v1110, 0
    %1117 = vmatprep.subr.mxu0 0.0
    %1118 = vmatpush1.msra.mxu0 %v1112
    %1119 = vmatprep.subr.mxu0 0.0
    %1120 = vmatpush1.msra.mxu0 0.0
    %1121 = vmatprep.subr.mxu0 0.0
    %1122 = vmatpush1.msra.mxu0 0.0
    %1123 = vmatprep.subr.mxu0 0.0
    %1124 = vmatpush1.msra.mxu0 0.0
    %1125 = vmatprep.subr.mxu0 0.0
    %1126 = vmatpush1.msra.mxu0 0.0
    %1127 = vmatprep.subr.mxu0 0.0
    %1128 = vmatpush1.msra.mxu0 0.0
    %1129 = vmatprep.subr.mxu0 0.0
    %1130 = vmatpush1.msra.mxu0 0.0
    %1131 = vmatprep.subr.mxu0 0.0
    %1132 = vmatpush1.msra.mxu0 0.0
    %1133 = vmatprep.subr.mxu0 0.0
    %1134 = vmatpush1.msra.mxu0 0.0
    %1135 = vmatprep.subr.mxu0 0.0
    %1136 = vmatpush1.msra.mxu0 0.0
    %1137 = vmatprep.subr.mxu0 0.0
    %1138 = vmatpush1.msra.mxu0 0.0
    %1139 = vmatprep.subr.mxu0 0.0
    %1140 = vmatpush1.msra.mxu0 0.0
    %1141 = vmatprep.subr.mxu0 0.0
    %1142 = vmatpush1.msra.mxu0 0.0
    %1143 = vmatprep.subr.mxu0 0.0
    %1144 = vmatpush1.msra.mxu0 0.0
    %1145 = vmatprep.subr.mxu0 0.0
    %1146 = vmatpush1.msra.mxu0 0.0
    %1147 = vmatprep.subr.mxu0 0.0
    %1148 = vmatpush1.msra.mxu0 0.0
    %1149 = vmatprep.subr.mxu0 0.0
    %1150 = vmatpush1.msra.mxu0 0.0
    %1151 = vmatprep.subr.mxu0 0.0
    %1152 = vmatpush1.msra.mxu0 0.0
    %1153 = vmatprep.subr.mxu0 0.0
    %1154 = vmatpush1.msra.mxu0 0.0
    %1155 = vmatprep.subr.mxu0 0.0
    %1156 = vmatpush1.msra.mxu0 0.0
    %1157 = vmatprep.subr.mxu0 0.0
    %1158 = vmatpush1.msra.mxu0 0.0
    %1159 = vmatprep.subr.mxu0 0.0
    %1160 = vmatpush1.msra.mxu0 0.0
    %1161 = vmatprep.subr.mxu0 0.0
    %1162 = vmatpush1.msra.mxu0 0.0
    %1163 = vmatprep.subr.mxu0 0.0
    %1164 = vmatpush1.msra.mxu0 0.0
    %1165 = vmatprep.subr.mxu0 0.0
    %1166 = vmatpush1.msra.mxu0 0.0
    %1167 = vmatprep.subr.mxu0 0.0
    %1168 = vmatpush1.msra.mxu0 0.0
    %1169 = vmatprep.subr.mxu0 0.0
    %1170 = vmatpush1.msra.mxu0 0.0
    %1171 = vmatprep.subr.mxu0 0.0
    %1172 = vmatpush1.msra.mxu0 0.0
    %1173 = vmatprep.subr.mxu0 0.0
    %1174 = vmatpush1.msra.mxu0 0.0
    %1175 = vmatprep.subr.mxu0 0.0
    %1176 = vmatpush1.msra.mxu0 0.0
    %1177 = vmatprep.subr.mxu0 0.0
    %1178 = vmatpush1.msra.mxu0 0.0
    %1179 = vmatprep.subr.mxu0 0.0
    %1180 = vmatpush1.msra.mxu0 0.0
    %1181 = vmatprep.mubr.f32.mxu0 0.0
    %1182 = vmatmul.mubr.f32.gmra.mrb[0].mxu0 %v1115
    %v1183 = vpop.f32.mrb[0].mxu0
    %v1184 = vadd.f32 0.0, %v1183
    %v1185 = vpop.f32.mrb[0].mxu0
    %1186 = vdwg.mxu0
    %1187 = vrot.lane.b32.xlu0 %v158, 112
    %v1188 = vpop.permute.xlu0 %1187
    %1189 = vrot.lane.b32.xlu0 %v158, 80
    %v1190 = vpop.permute.xlu0 %1189
    %v1191 = vsel %vm164, %v1188, 0
    %v1193 = vsel %vm164, %v1190, 0
    %1195 = vmatprep.subr.mxu0 0.0
    %1196 = vmatpush1.xpose.msra.mxu0 %v1193
    %1197 = vmatprep.subr.mxu0 0.0
    %1198 = vmatpush1.xpose.msra.mxu0 0.0
    %1199 = vmatprep.subr.mxu0 0.0
    %1200 = vmatpush1.xpose.msra.mxu0 0.0
    %1201 = vmatprep.subr.mxu0 0.0
    %1202 = vmatpush1.xpose.msra.mxu0 0.0
    %1203 = vmatprep.subr.mxu0 0.0
    %1204 = vmatpush1.xpose.msra.mxu0 0.0
    %1205 = vmatprep.subr.mxu0 0.0
    %1206 = vmatpush1.xpose.msra.mxu0 0.0
    %1207 = vmatprep.subr.mxu0 0.0
    %1208 = vmatpush1.xpose.msra.mxu0 0.0
    %1209 = vmatprep.subr.mxu0 0.0
    %1210 = vmatpush1.xpose.msra.mxu0 0.0
    %1211 = vmatprep.subr.mxu0 0.0
    %1212 = vmatpush1.xpose.msra.mxu0 0.0
    %1213 = vmatprep.subr.mxu0 0.0
    %1214 = vmatpush1.xpose.msra.mxu0 0.0
    %1215 = vmatprep.subr.mxu0 0.0
    %1216 = vmatpush1.xpose.msra.mxu0 0.0
    %1217 = vmatprep.subr.mxu0 0.0
    %1218 = vmatpush1.xpose.msra.mxu0 0.0
    %1219 = vmatprep.subr.mxu0 0.0
    %1220 = vmatpush1.xpose.msra.mxu0 0.0
    %1221 = vmatprep.subr.mxu0 0.0
    %1222 = vmatpush1.xpose.msra.mxu0 0.0
    %1223 = vmatprep.subr.mxu0 0.0
    %1224 = vmatpush1.xpose.msra.mxu0 0.0
    %1225 = vmatprep.subr.mxu0 0.0
    %1226 = vmatpush1.xpose.msra.mxu0 0.0
    %1227 = vmatprep.subr.mxu0 0.0
    %1228 = vmatpush1.xpose.msra.mxu0 0.0
    %1229 = vmatprep.subr.mxu0 0.0
    %1230 = vmatpush1.xpose.msra.mxu0 0.0
    %1231 = vmatprep.subr.mxu0 0.0
    %1232 = vmatpush1.xpose.msra.mxu0 0.0
    %1233 = vmatprep.subr.mxu0 0.0
    %1234 = vmatpush1.xpose.msra.mxu0 0.0
    %1235 = vmatprep.subr.mxu0 0.0
    %1236 = vmatpush1.xpose.msra.mxu0 0.0
    %1237 = vmatprep.subr.mxu0 0.0
    %1238 = vmatpush1.xpose.msra.mxu0 0.0
    %1239 = vmatprep.subr.mxu0 0.0
    %1240 = vmatpush1.xpose.msra.mxu0 0.0
    %1241 = vmatprep.subr.mxu0 0.0
    %1242 = vmatpush1.xpose.msra.mxu0 0.0
    %1243 = vmatprep.subr.mxu0 0.0
    %1244 = vmatpush1.xpose.msra.mxu0 0.0
    %1245 = vmatprep.subr.mxu0 0.0
    %1246 = vmatpush1.xpose.msra.mxu0 0.0
    %1247 = vmatprep.subr.mxu0 0.0
    %1248 = vmatpush1.xpose.msra.mxu0 0.0
    %1249 = vmatprep.subr.mxu0 0.0
    %1250 = vmatpush1.xpose.msra.mxu0 0.0
    %1251 = vmatprep.subr.mxu0 0.0
    %1252 = vmatpush1.xpose.msra.mxu0 0.0
    %1253 = vmatprep.subr.mxu0 0.0
    %1254 = vmatpush1.xpose.msra.mxu0 0.0
    %1255 = vmatprep.subr.mxu0 0.0
    %1256 = vmatpush1.xpose.msra.mxu0 0.0
    %1257 = vmatprep.subr.mxu0 0.0
    %1258 = vmatpush1.xpose.msra.mxu0 0.0
    %1259 = vmatprep.mubr.f32.mxu0 0.0
    %1260 = vmatmul.mubr.f32.gmra.mrb[0].mxu0 %v1191
    %v1261 = vpop.f32.mrb[0].mxu0
    %v1262 = vadd.f32 0.0, %v1261
    %v1263 = vpop.f32.mrb[0].mxu0
    %1264 = vdwg.mxu0
    %v1265 = vmul.f32 %v1262, 0.35355338
    %v1266 = vadd.f32 %v1265, %v931
    %v1267 = vsel %vm164, %v1266, -inf
    %1268 = vmax.xlane.f32.xlu0 %v1267
    %v1269 = vpop.xlane.xlu0 %1268
    %v1270 = vsub.f32 %v1266, %v1269
    %v1271 = vmul.f32 %v1270, 1.442695
    %v1272 = vpow.pop %v1271
    %v1273 = vsel %vm164, %v1272, 0.0
    %1274 = vadd.xlane.f32.xlu0 %v1273
    %v1275 = vpop.xlane.xlu0 %1274
    %v1276 = vrcp.pop %v1275
    %v1277 = vmul.f32 %v1272, %v1276
    %1278 = vrot.lane.b32.xlu0 %v158, 48
    %v1279 = vpop.permute.xlu0 %1278
    %v1282 = vsel %vm164, %v1277, 0
    %1284 = vmatprep.subr.mxu0 0.0
    %1285 = vmatpush1.msra.mxu0 %v1279
    %1286 = vmatprep.subr.mxu0 0.0
    %1287 = vmatpush1.msra.mxu0 0.0
    %1288 = vmatprep.subr.mxu0 0.0
    %1289 = vmatpush1.msra.mxu0 0.0
    %1290 = vmatprep.subr.mxu0 0.0
    %1291 = vmatpush1.msra.mxu0 0.0
    %1292 = vmatprep.subr.mxu0 0.0
    %1293 = vmatpush1.msra.mxu0 0.0
    %1294 = vmatprep.subr.mxu0 0.0
    %1295 = vmatpush1.msra.mxu0 0.0
    %1296 = vmatprep.subr.mxu0 0.0
    %1297 = vmatpush1.msra.mxu0 0.0
    %1298 = vmatprep.subr.mxu0 0.0
    %1299 = vmatpush1.msra.mxu0 0.0
    %1300 = vmatprep.subr.mxu0 0.0
    %1301 = vmatpush1.msra.mxu0 0.0
    %1302 = vmatprep.subr.mxu0 0.0
    %1303 = vmatpush1.msra.mxu0 0.0
    %1304 = vmatprep.subr.mxu0 0.0
    %1305 = vmatpush1.msra.mxu0 0.0
    %1306 = vmatprep.subr.mxu0 0.0
    %1307 = vmatpush1.msra.mxu0 0.0
    %1308 = vmatprep.subr.mxu0 0.0
    %1309 = vmatpush1.msra.mxu0 0.0
    %1310 = vmatprep.subr.mxu0 0.0
    %1311 = vmatpush1.msra.mxu0 0.0
    %1312 = vmatprep.subr.mxu0 0.0
    %1313 = vmatpush1.msra.mxu0 0.0
    %1314 = vmatprep.subr.mxu0 0.0
    %1315 = vmatpush1.msra.mxu0 0.0
    %1316 = vmatprep.subr.mxu0 0.0
    %1317 = vmatpush1.msra.mxu0 0.0
    %1318 = vmatprep.subr.mxu0 0.0
    %1319 = vmatpush1.msra.mxu0 0.0
    %1320 = vmatprep.subr.mxu0 0.0
    %1321 = vmatpush1.msra.mxu0 0.0
    %1322 = vmatprep.subr.mxu0 0.0
    %1323 = vmatpush1.msra.mxu0 0.0
    %1324 = vmatprep.subr.mxu0 0.0
    %1325 = vmatpush1.msra.mxu0 0.0
    %1326 = vmatprep.subr.mxu0 0.0
    %1327 = vmatpush1.msra.mxu0 0.0
    %1328 = vmatprep.subr.mxu0 0.0
    %1329 = vmatpush1.msra.mxu0 0.0
    %1330 = vmatprep.subr.mxu0 0.0
    %1331 = vmatpush1.msra.mxu0 0.0
    %1332 = vmatprep.subr.mxu0 0.0
    %1333 = vmatpush1.msra.mxu0 0.0
    %1334 = vmatprep.subr.mxu0 0.0
    %1335 = vmatpush1.msra.mxu0 0.0
    %1336 = vmatprep.subr.mxu0 0.0
    %1337 = vmatpush1.msra.mxu0 0.0
    %1338 = vmatprep.subr.mxu0 0.0
    %1339 = vmatpush1.msra.mxu0 0.0
    %1340 = vmatprep.subr.mxu0 0.0
    %1341 = vmatpush1.msra.mxu0 0.0
    %1342 = vmatprep.subr.mxu0 0.0
    %1343 = vmatpush1.msra.mxu0 0.0
    %1344 = vmatprep.subr.mxu0 0.0
    %1345 = vmatpush1.msra.mxu0 0.0
    %1346 = vmatprep.subr.mxu0 0.0
    %1347 = vmatpush1.msra.mxu0 0.0
    %1348 = vmatprep.mubr.f32.mxu0 0.0
    %1349 = vmatmul.mubr.f32.gmra.mrb[0].mxu0 %v1282
    %v1350 = vpop.f32.mrb[0].mxu0
    %v1351 = vadd.f32 0.0, %v1350
    %v1352 = vpop.f32.mrb[0].mxu0
    %1353 = vdwg.mxu0
    %1354 = vrot.lane.b32.xlu0 %v158, 104
    %v1355 = vpop.permute.xlu0 %1354
    %1356 = vrot.lane.b32.xlu0 %v158, 72
    %v1357 = vpop.permute.xlu0 %1356
    %v1358 = vsel %vm164, %v1355, 0
    %v1360 = vsel %vm164, %v1357, 0
    %1362 = vmatprep.subr.mxu0 0.0
    %1363 = vmatpush1.xpose.msra.mxu0 %v1360
    %1364 = vmatprep.subr.mxu0 0.0
    %1365 = vmatpush1.xpose.msra.mxu0 0.0
    %1366 = vmatprep.subr.mxu0 0.0
    %1367 = vmatpush1.xpose.msra.mxu0 0.0
    %1368 = vmatprep.subr.mxu0 0.0
    %1369 = vmatpush1.xpose.msra.mxu0 0.0
    %1370 = vmatprep.subr.mxu0 0.0
    %1371 = vmatpush1.xpose.msra.mxu0 0.0
    %1372 = vmatprep.subr.mxu0 0.0
    %1373 = vmatpush1.xpose.msra.mxu0 0.0
    %1374 = vmatprep.subr.mxu0 0.0
    %1375 = vmatpush1.xpose.msra.mxu0 0.0
    %1376 = vmatprep.subr.mxu0 0.0
    %1377 = vmatpush1.xpose.msra.mxu0 0.0
    %1378 = vmatprep.subr.mxu0 0.0
    %1379 = vmatpush1.xpose.msra.mxu0 0.0
    %1380 = vmatprep.subr.mxu0 0.0
    %1381 = vmatpush1.xpose.msra.mxu0 0.0
    %1382 = vmatprep.subr.mxu0 0.0
    %1383 = vmatpush1.xpose.msra.mxu0 0.0
    %1384 = vmatprep.subr.mxu0 0.0
    %1385 = vmatpush1.xpose.msra.mxu0 0.0
    %1386 = vmatprep.subr.mxu0 0.0
    %1387 = vmatpush1.xpose.msra.mxu0 0.0
    %1388 = vmatprep.subr.mxu0 0.0
    %1389 = vmatpush1.xpose.msra.mxu0 0.0
    %1390 = vmatprep.subr.mxu0 0.0
    %1391 = vmatpush1.xpose.msra.mxu0 0.0
    %1392 = vmatprep.subr.mxu0 0.0
    %1393 = vmatpush1.xpose.msra.mxu0 0.0
    %1394 = vmatprep.subr.mxu0 0.0
    %1395 = vmatpush1.xpose.msra.mxu0 0.0
    %1396 = vmatprep.subr.mxu0 0.0
    %1397 = vmatpush1.xpose.msra.mxu0 0.0
    %1398 = vmatprep.subr.mxu0 0.0
    %1399 = vmatpush1.xpose.msra.mxu0 0.0
    %1400 = vmatprep.subr.mxu0 0.0
    %1401 = vmatpush1.xpose.msra.mxu0 0.0
    %1402 = vmatprep.subr.mxu0 0.0
    %1403 = vmatpush1.xpose.msra.mxu0 0.0
    %1404 = vmatprep.subr.mxu0 0.0
    %1405 = vmatpush1.xpose.msra.mxu0 0.0
    %1406 = vmatprep.subr.mxu0 0.0
    %1407 = vmatpush1.xpose.msra.mxu0 0.0
    %1408 = vmatprep.subr.mxu0 0.0
    %1409 = vmatpush1.xpose.msra.mxu0 0.0
    %1410 = vmatprep.subr.mxu0 0.0
    %1411 = vmatpush1.xpose.msra.mxu0 0.0
    %1412 = vmatprep.subr.mxu0 0.0
    %1413 = vmatpush1.xpose.msra.mxu0 0.0
    %1414 = vmatprep.subr.mxu0 0.0
    %1415 = vmatpush1.xpose.msra.mxu0 0.0
    %1416 = vmatprep.subr.mxu0 0.0
    %1417 = vmatpush1.xpose.msra.mxu0 0.0
    %1418 = vmatprep.subr.mxu0 0.0
    %1419 = vmatpush1.xpose.msra.mxu0 0.0
    %1420 = vmatprep.subr.mxu0 0.0
    %1421 = vmatpush1.xpose.msra.mxu0 0.0
    %1422 = vmatprep.subr.mxu0 0.0
    %1423 = vmatpush1.xpose.msra.mxu0 0.0
    %1424 = vmatprep.subr.mxu0 0.0
    %1425 = vmatpush1.xpose.msra.mxu0 0.0
    %1426 = vmatprep.mubr.f32.mxu0 0.0
    %1427 = vmatmul.mubr.f32.gmra.mrb[0].mxu0 %v1358
    %v1428 = vpop.f32.mrb[0].mxu0
    %v1429 = vadd.f32 0.0, %v1428
    %v1430 = vpop.f32.mrb[0].mxu0
    %1431 = vdwg.mxu0
    %v1432 = vmul.f32 %v1429, 0.35355338
    %v1433 = vadd.f32 %v1432, %v931
    %v1434 = vsel %vm164, %v1433, -inf
    %1435 = vmax.xlane.f32.xlu0 %v1434
    %v1436 = vpop.xlane.xlu0 %1435
    %v1437 = vsub.f32 %v1433, %v1436
    %v1438 = vmul.f32 %v1437, 1.442695
    %v1439 = vpow.pop %v1438
    %v1440 = vsel %vm164, %v1439, 0.0
    %1441 = vadd.xlane.f32.xlu0 %v1440
    %v1442 = vpop.xlane.xlu0 %1441
    %v1443 = vrcp.pop %v1442
    %v1444 = vmul.f32 %v1439, %v1443
    %1445 = vrot.lane.b32.xlu0 %v158, 40
    %v1446 = vpop.permute.xlu0 %1445
    %v1449 = vsel %vm164, %v1444, 0
    %1451 = vmatprep.subr.mxu0 0.0
    %1452 = vmatpush1.msra.mxu0 %v1446
    %1453 = vmatprep.subr.mxu0 0.0
    %1454 = vmatpush1.msra.mxu0 0.0
    %1455 = vmatprep.subr.mxu0 0.0
    %1456 = vmatpush1.msra.mxu0 0.0
    %1457 = vmatprep.subr.mxu0 0.0
    %1458 = vmatpush1.msra.mxu0 0.0
    %1459 = vmatprep.subr.mxu0 0.0
    %1460 = vmatpush1.msra.mxu0 0.0
    %1461 = vmatprep.subr.mxu0 0.0
    %1462 = vmatpush1.msra.mxu0 0.0
    %1463 = vmatprep.subr.mxu0 0.0
    %1464 = vmatpush1.msra.mxu0 0.0
    %1465 = vmatprep.subr.mxu0 0.0
    %1466 = vmatpush1.msra.mxu0 0.0
    %1467 = vmatprep.subr.mxu0 0.0
    %1468 = vmatpush1.msra.mxu0 0.0
    %1469 = vmatprep.subr.mxu0 0.0
    %1470 = vmatpush1.msra.mxu0 0.0
    %1471 = vmatprep.subr.mxu0 0.0
    %1472 = vmatpush1.msra.mxu0 0.0
    %1473 = vmatprep.subr.mxu0 0.0
    %1474 = vmatpush1.msra.mxu0 0.0
    %1475 = vmatprep.subr.mxu0 0.0
    %1476 = vmatpush1.msra.mxu0 0.0
    %1477 = vmatprep.subr.mxu0 0.0
    %1478 = vmatpush1.msra.mxu0 0.0
    %1479 = vmatprep.subr.mxu0 0.0
    %1480 = vmatpush1.msra.mxu0 0.0
    %1481 = vmatprep.subr.mxu0 0.0
    %1482 = vmatpush1.msra.mxu0 0.0
    %1483 = vmatprep.subr.mxu0 0.0
    %1484 = vmatpush1.msra.mxu0 0.0
    %1485 = vmatprep.subr.mxu0 0.0
    %1486 = vmatpush1.msra.mxu0 0.0
    %1487 = vmatprep.subr.mxu0 0.0
    %1488 = vmatpush1.msra.mxu0 0.0
    %1489 = vmatprep.subr.mxu0 0.0
    %1490 = vmatpush1.msra.mxu0 0.0
    %1491 = vmatprep.subr.mxu0 0.0
    %1492 = vmatpush1.msra.mxu0 0.0
    %1493 = vmatprep.subr.mxu0 0.0
    %1494 = vmatpush1.msra.mxu0 0.0
    %1495 = vmatprep.subr.mxu0 0.0
    %1496 = vmatpush1.msra.mxu0 0.0
    %1497 = vmatprep.subr.mxu0 0.0
    %1498 = vmatpush1.msra.mxu0 0.0
    %1499 = vmatprep.subr.mxu0 0.0
    %1500 = vmatpush1.msra.mxu0 0.0
    %1501 = vmatprep.subr.mxu0 0.0
    %1502 = vmatpush1.msra.mxu0 0.0
    %1503 = vmatprep.subr.mxu0 0.0
    %1504 = vmatpush1.msra.mxu0 0.0
    %1505 = vmatprep.subr.mxu0 0.0
    %1506 = vmatpush1.msra.mxu0 0.0
    %1507 = vmatprep.subr.mxu0 0.0
    %1508 = vmatpush1.msra.mxu0 0.0
    %1509 = vmatprep.subr.mxu0 0.0
    %1510 = vmatpush1.msra.mxu0 0.0
    %1511 = vmatprep.subr.mxu0 0.0
    %1512 = vmatpush1.msra.mxu0 0.0
    %1513 = vmatprep.subr.mxu0 0.0
    %1514 = vmatpush1.msra.mxu0 0.0
    %1515 = vmatprep.mubr.f32.mxu0 0.0
    %1516 = vmatmul.mubr.f32.gmra.mrb[0].mxu0 %v1449
    %v1517 = vpop.f32.mrb[0].mxu0
    %v1518 = vadd.f32 0.0, %v1517
    %v1519 = vpop.f32.mrb[0].mxu0
    %1520 = vdwg.mxu0
    %1522 = vrot.lane.b32.xlu0 %v1184, 8
    %v1523 = vpop.permute.xlu0 %1522
    %1526 = vrot.lane.b32.xlu0 %v1351, 16
    %v1527 = vpop.permute.xlu0 %1526
    %1530 = vrot.lane.b32.xlu0 %v1518, 24
    %v1531 = vpop.permute.xlu0 %1530
    %v1533 = vsel %vm164, %v1017, %v1523
    %v1534 = vsel %vm846, %v1533, %v1527
    %v1535 = vsel %vm848, %v1534, %v1531
    %v1536 = vld [vmem:[%s5] sm:$0x7]
    %v1537 = vld [vmem:[#allocation7] sm:$0xff]
    %v1538 = vld [vmem:[#allocation7 + $0x8] sm:$0xff]
    %v1539 = vld [vmem:[#allocation7 + $0x10] sm:$0xff]
    %v1540 = vld [vmem:[#allocation7 + $0x18] sm:$0xff]
    %v1541 = vlaneseq
    %v1542 = vshrl.u32 %v1541, 7
    %v1543 = vsub.s32 0, %v1542
    %v1544 = vrot.slane %v1536, %v1543
    %v1546 = vsel %vm79, %v849, 0
    %v1549 = vsel %vm79, %v1535, 0
    %1551 = vmatprep.subr.mxu0 0.0
    %1552 = vmatpush1.msra.mxu0 %v1537
    %1553 = vmatprep.subr.mxu0 0.0
    %1554 = vmatpush1.msra.mxu0 %v1538
    %1555 = vmatprep.subr.mxu0 0.0
    %1556 = vmatpush1.msra.mxu0 %v1539
    %1557 = vmatprep.subr.mxu0 0.0
    %1558 = vmatpush1.msra.mxu0 %v1540
    %1559 = vmatprep.subr.mxu0 0.0
    %1560 = vmatpush1.msra.mxu0 0.0
    %1561 = vmatprep.subr.mxu0 0.0
    %1562 = vmatpush1.msra.mxu0 0.0
    %1563 = vmatprep.subr.mxu0 0.0
    %1564 = vmatpush1.msra.mxu0 0.0
    %1565 = vmatprep.subr.mxu0 0.0
    %1566 = vmatpush1.msra.mxu0 0.0
    %1567 = vmatprep.subr.mxu0 0.0
    %1568 = vmatpush1.msra.mxu0 0.0
    %1569 = vmatprep.subr.mxu0 0.0
    %1570 = vmatpush1.msra.mxu0 0.0
    %1571 = vmatprep.subr.mxu0 0.0
    %1572 = vmatpush1.msra.mxu0 0.0
    %1573 = vmatprep.subr.mxu0 0.0
    %1574 = vmatpush1.msra.mxu0 0.0
    %1575 = vmatprep.subr.mxu0 0.0
    %1576 = vmatpush1.msra.mxu0 0.0
    %1577 = vmatprep.subr.mxu0 0.0
    %1578 = vmatpush1.msra.mxu0 0.0
    %1579 = vmatprep.subr.mxu0 0.0
    %1580 = vmatpush1.msra.mxu0 0.0
    %1581 = vmatprep.subr.mxu0 0.0
    %1582 = vmatpush1.msra.mxu0 0.0
    %1583 = vmatprep.subr.mxu0 0.0
    %1584 = vmatpush1.msra.mxu0 0.0
    %1585 = vmatprep.subr.mxu0 0.0
    %1586 = vmatpush1.msra.mxu0 0.0
    %1587 = vmatprep.subr.mxu0 0.0
    %1588 = vmatpush1.msra.mxu0 0.0
    %1589 = vmatprep.subr.mxu0 0.0
    %1590 = vmatpush1.msra.mxu0 0.0
    %1591 = vmatprep.subr.mxu0 0.0
    %1592 = vmatpush1.msra.mxu0 0.0
    %1593 = vmatprep.subr.mxu0 0.0
    %1594 = vmatpush1.msra.mxu0 0.0
    %1595 = vmatprep.subr.mxu0 0.0
    %1596 = vmatpush1.msra.mxu0 0.0
    %1597 = vmatprep.subr.mxu0 0.0
    %1598 = vmatpush1.msra.mxu0 0.0
    %1599 = vmatprep.subr.mxu0 0.0
    %1600 = vmatpush1.msra.mxu0 0.0
    %1601 = vmatprep.subr.mxu0 0.0
    %1602 = vmatpush1.msra.mxu0 0.0
    %1603 = vmatprep.subr.mxu0 0.0
    %1604 = vmatpush1.msra.mxu0 0.0
    %1605 = vmatprep.subr.mxu0 0.0
    %1606 = vmatpush1.msra.mxu0 0.0
    %1607 = vmatprep.subr.mxu0 0.0
    %1608 = vmatpush1.msra.mxu0 0.0
    %1609 = vmatprep.subr.mxu0 0.0
    %1610 = vmatpush1.msra.mxu0 0.0
    %1611 = vmatprep.subr.mxu0 0.0
    %1612 = vmatpush1.msra.mxu0 0.0
    %1613 = vmatprep.subr.mxu0 0.0
    %1614 = vmatpush1.msra.mxu0 0.0
    %1615 = vmatprep.mubr.f32.mxu0 0.0
    %1616 = vmatmul.mubr.f32.gmra.mrb[0].mxu0 %v1546
    %v1617 = vpop.f32.mrb[0].mxu0
    %v1618 = vadd.f32 %v1544, %v1617
    %v1619 = vpop.f32.mrb[0].mxu0
    %1620 = vmatprep.mubr.f32.mxu0 0.0
    %1621 = vmatmul.mubr.f32.gmra.mrb[0].mxu0 %v1549
    %v1622 = vpop.f32.mrb[0].mxu0
    %v1623 = vadd.f32 %v1544, %v1622
    %v1624 = vpop.f32.mrb[0].mxu0
    %1625 = vdwg.mxu0
    %v1626 = vadd.f32 %v65, %v1618
    %v1627 = vadd.f32 %v66, %v1623
    %v1628 = vsel %vm79, %v1626, 0.0
    %1629 = vadd.xlane.f32.xlu0 %v1628
    %v1630 = vpop.xlane.xlu0 %1629
    %v1631 = vsel %vm79, %v1627, 0.0
    %1632 = vadd.xlane.f32.xlu0 %v1631
    %v1633 = vpop.xlane.xlu0 %1632
    %v1634 = vrcp.pop 32.0
    %v1635 = vmul.f32 %v1630, %v1634
    %v1636 = vmul.f32 %v1633, %v1634
    %v1637 = vsub.f32 %v1626, %v1635
    %v1638 = vsub.f32 %v1627, %v1636
    %v1639 = vmul.f32 %v1637, %v1637
    %v1640 = vmul.f32 %v1638, %v1638
    %v1641 = vsel %vm79, %v1639, 0.0
    %1642 = vadd.xlane.f32.xlu0 %v1641
    %v1643 = vpop.xlane.xlu0 %1642
    %v1644 = vsel %vm79, %v1640, 0.0
    %1645 = vadd.xlane.f32.xlu0 %v1644
    %v1646 = vpop.xlane.xlu0 %1645
    %v1647 = vmul.f32 %v1643, %v1634
    %v1648 = vmul.f32 %v1646, %v1634
    %v1649 = vadd.f32 %v1647, 1e-12
    %v1650 = vadd.f32 %v1648, 1e-12
    %v1651 = vrsqrt.pop %v1649
    %v1652 = vrsqrt.pop %v1650
    %v1653 = vmul.f32 %v1637, %v1651
    %v1654 = vmul.f32 %v1638, %v1652
    %v1655 = vlaneseq
    %v1656 = vshrl.u32 %v1655, 7
    %v1657 = vsub.s32 1, %v1656
    %v1658 = vrot.slane %v1536, %v1657
    %v1659 = vmul.f32 %v1653, %v1658
    %v1660 = vmul.f32 %v1654, %v1658
    %v1661 = vlaneseq
    %v1662 = vshrl.u32 %v1661, 7
    %v1663 = vsub.s32 2, %v1662
    %v1664 = vrot.slane %v1536, %v1663
    %v1665 = vadd.f32 %v1659, %v1664
    %v1666 = vadd.f32 %v1660, %v1664
    %1667 = vst.msk [vmem:[#allocation8] sm:$0xff] %vm79, %v1665
    %1668 = vst.msk [vmem:[#allocation8 + $0x8] sm:$0xff] %vm79, %v1666
    // Predicated region
    $region38: #{tpu_custom_call.1} parent=1 // pred_check
      _
    $region39: #{tpu_custom_call.1} parent=1 // pred_check_branch
      %1670 = sbr.rel (0) target = $region41
    $region40: #{tpu_custom_call.1} parent=1 // pred_region
      %s1672 = ssub.s32 256, 256
      %1673 = vsyncadd [#allocation4], %s1672
      %s1674 = sshll.u32 [#allocation8], 4
      %s1675 = int_to_ptr.vmem [resolvable:$true] %s1674
      %1680 = dma.vmem_to_hbm [thread:$0]  %s1675, 256, %s6, [#allocation4], 128, 128, 8
    $region41: #{tpu_custom_call.1} parent=1 // pred_fallthru
      _
    // Predicated region
    $region42: #{tpu_custom_call.1} parent=1 // pred_check
      _
    $region43: #{tpu_custom_call.1} parent=1 // pred_check_branch
      %1682 = sbr.rel (0) target = $region45
    $region44: #{tpu_custom_call.1} parent=1 // pred_region
      %1683 = dma.done [#allocation4], 256
    $region45: #{tpu_custom_call.1} parent=1 // pred_fallthru
      _
    %1684 = vsyncpa [#allocation3], 1
    %1685 = vsyncpa [#allocation6], 1
    %1686 = vsyncpa [#allocation4], 1

</llo_original>
